<compile_context>
chip_gen: v7x
topology: tpu7x:2x2x1
jax: 0.10.0
libtpu: 0.0.40
codegen_flags: <defaults>
</compile_context>

<pallas_src>
import functools

import numpy as np
import jax
import jax.numpy as jnp
from jax import lax
from jax.experimental import pallas as pl
from jax.experimental.pallas import tpu as pltpu


# --------------------------------------------------------------------------
# Static spatial operators (host-side numpy, tiny, cached per shape)
# --------------------------------------------------------------------------
def adaptive_pool_matrix(in_size, out_size):
    """Row i averages x[floor(i*in/out) : ceil((i+1)*in/out)] (PyTorch rule)."""
    P = np.zeros((out_size, in_size), np.float32)
    for i in range(out_size):
        start = (i * in_size) // out_size
        end = -((-(i + 1) * in_size) // out_size)  # ceil((i+1)*in/out)
        P[i, start:end] = 1.0 / (end - start)
    return P


def bilinear_matrix(in_size, out_size, align_corners=False):
    """1-D bilinear interpolation weights, shape (out_size, in_size)."""
    U = np.zeros((out_size, in_size), np.float32)
    for i in range(out_size):
        if align_corners:
            src = 0.0 if out_size == 1 else i * (in_size - 1) / (out_size - 1)
        else:
            src = max((i + 0.5) * in_size / out_size - 0.5, 0.0)
        x0 = min(int(np.floor(src)), in_size - 1)
        x1 = min(x0 + 1, in_size - 1)
        lam = src - x0
        U[i, x0] += 1.0 - lam
        U[i, x1] += lam
    return U


@functools.lru_cache(maxsize=None)
def _packed_spatial_operators(H, W, sizes, align_corners):
    """All pyramid stages packed onto ONE lane axis of width S2P (>=128).

    poolT : (HW, S2P)  columns [off_k, off_k+s_k^2) = stage-k pooling operator^T
    upT   : (S2P, HW)  rows    [off_k, off_k+s_k^2) = stage-k bilinear operator^T
                        row `bias_lane` = all ones (bias broadcast folded in)
    """
    HW = H * W
    total = sum(s * s for s in sizes)
    bias_lane = total
    S2P = max(128, ((total + 1 + 127) // 128) * 128)
    poolT = np.zeros((HW, S2P), np.float32)
    upT = np.zeros((S2P, HW), np.float32)
    bounds = []
    off = 0
    for s in sizes:
        P = np.kron(adaptive_pool_matrix(H, s), adaptive_pool_matrix(W, s))   # (s*s, HW)
        U = np.kron(bilinear_matrix(s, H, align_corners),
                    bilinear_matrix(s, W, align_corners))                     # (HW, s*s)
        poolT[:, off:off + s * s] = P.T
        upT[off:off + s * s, :] = U.T
        bounds.append((off, off + s * s))
        off += s * s
    upT[bias_lane, :] = 1.0
    return poolT, upT, tuple(bounds), bias_lane, S2P


# --------------------------------------------------------------------------
# Fused Pallas kernel: entire PSP_5 forward for one batch element per grid step
# --------------------------------------------------------------------------
def _psp_fused_kernel(x_ref, wfold_ref, wid_ref, poolT_ref, upT_ref, biasc_ref,
                      o_ref, *, stage_bounds):
    cdt = x_ref.dtype
    x = x_ref[0]                                                    # (C, HW)
    OF = wid_ref.shape[0]
    S2P = poolT_ref.shape[-1]

    # One packed pooling matmul for ALL pyramid stages: (C, HW) @ (HW, S2P).
    pooled = jnp.dot(x, poolT_ref[...],
                     preferred_element_type=jnp.float32)            # (C, S2P)
    pooled = pooled.astype(cdt)

    # Per-stage folded 1x1 convs on the packed pooled axis, masked to each
    # stage's lane range (cheap VPU select) and summed.  conv_sum starts with
    # the bias vector pre-placed in the dedicated bias lane.
    lane = lax.broadcasted_iota(jnp.int32, (OF, S2P), 1)
    conv_sum = biasc_ref[...].astype(jnp.float32)                   # (OF, S2P)
    for k, (lo, hi) in enumerate(stage_bounds):
        conv_k = jnp.dot(wfold_ref[k], pooled,
                         preferred_element_type=jnp.float32)        # (OF, S2P)
        conv_sum = conv_sum + jnp.where((lane >= lo) & (lane < hi), conv_k, 0.0)

    # Identity branch + ONE combined upsample matmul (bias row folded into upT).
    acc = jnp.dot(wid_ref[...], x, preferred_element_type=jnp.float32)    # (OF, HW)
    acc = acc + jnp.dot(conv_sum.astype(cdt), upT_ref[...],
                        preferred_element_type=jnp.float32)
    o_ref[0] = jnp.maximum(acc, 0.0).astype(o_ref.dtype)


# --------------------------------------------------------------------------
# Wrapper: fold weights, build packed spatial operators, single pallas_call
# --------------------------------------------------------------------------
def psp5_forward(feats, params, sizes=(1, 2, 3, 6),
                 compute_dtype=jnp.bfloat16, out_dtype=jnp.float32,
                 align_corners=False):
    B, C, H, W = feats.shape
    HW = H * W
    n = len(sizes)
    Wb = params['bottleneck_w']                        # (OF, C*(n+1))
    OF = Wb.shape[0]

    # Fold each stage 1x1 conv into its matching bottleneck column block.
    w_fold = jnp.stack(
        [Wb[:, k * C:(k + 1) * C] @ params['stage_w'][k] for k in range(n)],
        axis=0)                                        # (n, OF, C)
    w_id = Wb[:, n * C:(n + 1) * C]                    # (OF, C), identity branch

    poolT, upT, bounds, bias_lane, S2P = _packed_spatial_operators(
        H, W, tuple(sizes), bool(align_corners))

    cdt = compute_dtype
    x = feats.reshape(B, C, HW).astype(cdt)
    biasc = jnp.zeros((OF, S2P), jnp.float32).at[:, bias_lane].set(
        params['bottleneck_b'].astype(jnp.float32))

    flops = B * (2 * C * HW * S2P          # packed pooling
                 + 2 * n * OF * C * S2P    # per-stage folded convs
                 + 2 * OF * C * HW         # identity branch
                 + 2 * OF * S2P * HW)      # combined upsample
    itm = jnp.dtype(cdt).itemsize
    bytes_accessed = int(B * C * HW * itm
                         + (n * OF * C + OF * C + HW * S2P + S2P * HW) * itm
                         + OF * S2P * 4
                         + B * OF * HW * jnp.dtype(out_dtype).itemsize)

    out = pl.pallas_call(
        functools.partial(_psp_fused_kernel, stage_bounds=bounds),
        out_shape=jax.ShapeDtypeStruct((B, OF, HW), out_dtype),
        grid=(B,),
        in_specs=[
            pl.BlockSpec((1, C, HW), lambda b: (b, 0, 0)),     # feats slab (per image)
            pl.BlockSpec((n, OF, C), lambda b: (0, 0, 0)),     # folded stage weights
            pl.BlockSpec((OF, C), lambda b: (0, 0)),           # identity bottleneck slice
            pl.BlockSpec((HW, S2P), lambda b: (0, 0)),         # packed pooling op^T
            pl.BlockSpec((S2P, HW), lambda b: (0, 0)),         # packed upsample op^T (+bias row)
            pl.BlockSpec((OF, S2P), lambda b: (0, 0)),         # bias in its packed lane
        ],
        out_specs=pl.BlockSpec((1, OF, HW), lambda b: (b, 0, 0)),
        compiler_params=pltpu.CompilerParams(
            dimension_semantics=("parallel",)),
        cost_estimate=pl.CostEstimate(flops=flops, transcendentals=0,
                                      bytes_accessed=bytes_accessed),
    )(x, w_fold.astype(cdt), w_id.astype(cdt),
      jnp.asarray(poolT, cdt), jnp.asarray(upT, cdt), biasc)

    return out.reshape(B, OF, H, W)


# --------------------------------------------------------------------------
# Pure-JAX reference mirroring the PyTorch forward literally (un-fused).
# HIGHEST precision so the comparison measures the kernel's error only.
# --------------------------------------------------------------------------
def psp5_reference(feats, params, sizes=(1, 2, 3, 6), align_corners=False):
    hp = lax.Precision.HIGHEST
    B, C, H, W = feats.shape
    priors = []
    for k, s in enumerate(sizes):
        Ph = jnp.asarray(adaptive_pool_matrix(H, s))
        Pw = jnp.asarray(adaptive_pool_matrix(W, s))
        pooled = jnp.einsum('bchw,ph,qw->bcpq', feats, Ph, Pw, precision=hp)
        conv = jnp.einsum('oc,bcpq->bopq', params['stage_w'][k], pooled,
                          precision=hp)
        Uh = jnp.asarray(bilinear_matrix(s, H, align_corners))
        Uw = jnp.asarray(bilinear_matrix(s, W, align_corners))
        priors.append(jnp.einsum('bcpq,hp,wq->bchw', conv, Uh, Uw, precision=hp))
    priors.append(feats)
    cat = jnp.concatenate(priors, axis=1)
    out = (jnp.einsum('oc,bchw->bohw', params['bottleneck_w'], cat, precision=hp)
           + params['bottleneck_b'][None, :, None, None])
    return jnp.maximum(out, 0.0)


def make_params(features, out_features, sizes=(1, 2, 3, 6), seed=42):
    n = len(sizes)
    keys = jax.random.split(jax.random.PRNGKey(seed), n + 2)
    params = {
        'stage_w': [0.1 * jax.random.normal(keys[k], (features, features), jnp.float32)
                    for k in range(n)],
        'bottleneck_w': 0.1 * jax.random.normal(
            keys[n], (out_features, features * (n + 1)), jnp.float32),
        'bottleneck_b': 0.1 * jax.random.normal(
            keys[n + 1], (out_features,), jnp.float32),
    }
    # PSP_5 also declares conv_h (512 -> features) but never calls it in
    # forward(); intentionally omitted.
    return params


if __name__ == "__main__":
    features, out_features, sizes = 32, 64, (1, 2, 3, 6)
    B, H, W = 2, 16, 16

    feats = jax.random.normal(jax.random.PRNGKey(0), (B, features, H, W),
                              jnp.float32)
    params = make_params(features, out_features, sizes)

    fwd = jax.jit(psp5_forward,
                  static_argnames=('sizes', 'compute_dtype', 'out_dtype',
                                   'align_corners'))

    ref = jax.block_until_ready(psp5_reference(feats, params, sizes))
    ref_scale = float(jnp.max(jnp.abs(ref))) + 1.0

    # 1) f32 compute path, tight tolerance (catches indexing / fold bugs;
    #    budget covers the MXU's multi-pass f32 emulation).
    out_f32 = jax.block_until_ready(
        fwd(feats, params, sizes=sizes, compute_dtype=jnp.float32))
    assert out_f32.shape == (B, out_features, H, W), out_f32.shape
    err_f32 = float(jnp.max(jnp.abs(out_f32 - ref)))
    tol_f32 = 2e-4 * ref_scale
    assert err_f32 <= tol_f32, f"f32 path: max |pallas - ref| = {err_f32} > {tol_f32}"

    # 2) bf16-MXU path (performance configuration), looser numeric check.
    out_bf16 = jax.block_until_ready(
        fwd(feats, params, sizes=sizes, compute_dtype=jnp.bfloat16))
    assert out_bf16.shape == (B, out_features, H, W), out_bf16.shape
    err_bf16 = float(jnp.max(jnp.abs(out_bf16 - ref)))
    tol_bf16 = 2e-2 * ref_scale
    assert err_bf16 <= tol_bf16, f"bf16 path: max |pallas - ref| = {err_bf16} > {tol_bf16}"
    assert bool(jnp.all(out_bf16 >= 0.0))   # ReLU output

    print("KERNEL_OK")
</pallas_src>

<mosaic_0001>
module attributes {stable_mosaic.version = 11 : i64} {
  func.func @_psp_fused_kernel(%arg0: i32, %arg1: memref<1x32x256xf32, #tpu.memory_space<vmem>>, %arg2: memref<4x64x32xf32, #tpu.memory_space<vmem>>, %arg3: memref<64x32xf32, #tpu.memory_space<vmem>>, %arg4: memref<256x128xf32, #tpu.memory_space<vmem>>, %arg5: memref<128x256xf32, #tpu.memory_space<vmem>>, %arg6: memref<64x128xf32, #tpu.memory_space<vmem>>, %arg7: memref<1x64x256xf32, #tpu.memory_space<vmem>>) attributes {dimension_semantics = [#tpu.dimension_semantics<parallel>], iteration_bounds = array<i64: 2>, scalar_prefetch = 0 : i64, scratch_operands = 0 : i64, tpu.core_type = #tpu.core_type<tc>, window_params = [{transform_indices = @transform_0, window_bounds = array<i64: 1, 32, 256>}, {pipeline_mode = #tpu.pipeline_mode<synchronous>, transform_indices = @transform_1, window_bounds = array<i64: 4, 64, 32>}, {pipeline_mode = #tpu.pipeline_mode<synchronous>, transform_indices = @transform_2, window_bounds = array<i64: 64, 32>}, {pipeline_mode = #tpu.pipeline_mode<synchronous>, transform_indices = @transform_3, window_bounds = array<i64: 256, 128>}, {pipeline_mode = #tpu.pipeline_mode<synchronous>, transform_indices = @transform_4, window_bounds = array<i64: 128, 256>}, {pipeline_mode = #tpu.pipeline_mode<synchronous>, transform_indices = @transform_5, window_bounds = array<i64: 64, 128>}, {transform_indices = @transform_6, window_bounds = array<i64: 1, 64, 256>}]} {
    %c0 = arith.constant 0 : index
    %c0_0 = arith.constant 0 : index
    %c0_1 = arith.constant 0 : index
    %0 = vector.load %arg1[%c0, %c0_0, %c0_1] : memref<1x32x256xf32, #tpu.memory_space<vmem>>, vector<1x32x256xf32>
    %1 = vector.shape_cast %0 : vector<1x32x256xf32> to vector<32x256xf32>
    %c0_2 = arith.constant 0 : index
    %c0_3 = arith.constant 0 : index
    %2 = vector.load %arg4[%c0_2, %c0_3] : memref<256x128xf32, #tpu.memory_space<vmem>>, vector<256x128xf32>
    %cst = arith.constant dense<0.000000e+00> : vector<32x128xf32>
    %3 = tpu.matmul %1, %2, %cst {dimension_numbers = #tpu.dot_dimension_numbers<[1], [0], [0], [1], [0, 0, 1, 1], [], []>} : vector<32x256xf32>, vector<256x128xf32>, vector<32x128xf32> -> vector<32x128xf32>
    %4 = tpu.iota {dimensions = array<i32: 1>} : vector<64x128xi32>
    %c0_4 = arith.constant 0 : index
    %c0_5 = arith.constant 0 : index
    %5 = vector.load %arg6[%c0_4, %c0_5] : memref<64x128xf32, #tpu.memory_space<vmem>>, vector<64x128xf32>
    %c0_6 = arith.constant 0 : index
    %c0_7 = arith.constant 0 : index
    %c0_8 = arith.constant 0 : index
    %6 = vector.load %arg2[%c0_6, %c0_7, %c0_8] : memref<4x64x32xf32, #tpu.memory_space<vmem>>, vector<1x64x32xf32>
    %7 = vector.shape_cast %6 : vector<1x64x32xf32> to vector<64x32xf32>
    %cst_9 = arith.constant dense<0.000000e+00> : vector<64x128xf32>
    %8 = tpu.matmul %7, %3, %cst_9 {dimension_numbers = #tpu.dot_dimension_numbers<[1], [0], [0], [1], [0, 0, 1, 1], [], []>} : vector<64x32xf32>, vector<32x128xf32>, vector<64x128xf32> -> vector<64x128xf32>
    %c0_i32 = arith.constant 0 : i32
    %9 = vector.broadcast %c0_i32 : i32 to vector<64x128xi32>
    %10 = arith.cmpi sge, %4, %9 : vector<64x128xi32>
    %c1_i32 = arith.constant 1 : i32
    %11 = vector.broadcast %c1_i32 : i32 to vector<64x128xi32>
    %12 = arith.cmpi slt, %4, %11 : vector<64x128xi32>
    %13 = arith.andi %10, %12 : vector<64x128xi1>
    %cst_10 = arith.constant 0.000000e+00 : f32
    %14 = vector.broadcast %cst_10 : f32 to vector<64x128xf32>
    %15 = arith.select %13, %8, %14 : vector<64x128xi1>, vector<64x128xf32>
    %16 = arith.addf %5, %15 : vector<64x128xf32>
    %c1 = arith.constant 1 : index
    %c0_11 = arith.constant 0 : index
    %c0_12 = arith.constant 0 : index
    %17 = vector.load %arg2[%c1, %c0_11, %c0_12] : memref<4x64x32xf32, #tpu.memory_space<vmem>>, vector<1x64x32xf32>
    %18 = vector.shape_cast %17 : vector<1x64x32xf32> to vector<64x32xf32>
    %cst_13 = arith.constant dense<0.000000e+00> : vector<64x128xf32>
    %19 = tpu.matmul %18, %3, %cst_13 {dimension_numbers = #tpu.dot_dimension_numbers<[1], [0], [0], [1], [0, 0, 1, 1], [], []>} : vector<64x32xf32>, vector<32x128xf32>, vector<64x128xf32> -> vector<64x128xf32>
    %c1_i32_14 = arith.constant 1 : i32
    %20 = vector.broadcast %c1_i32_14 : i32 to vector<64x128xi32>
    %21 = arith.cmpi sge, %4, %20 : vector<64x128xi32>
    %c5_i32 = arith.constant 5 : i32
    %22 = vector.broadcast %c5_i32 : i32 to vector<64x128xi32>
    %23 = arith.cmpi slt, %4, %22 : vector<64x128xi32>
    %24 = arith.andi %21, %23 : vector<64x128xi1>
    %cst_15 = arith.constant 0.000000e+00 : f32
    %25 = vector.broadcast %cst_15 : f32 to vector<64x128xf32>
    %26 = arith.select %24, %19, %25 : vector<64x128xi1>, vector<64x128xf32>
    %27 = arith.addf %16, %26 : vector<64x128xf32>
    %c2 = arith.constant 2 : index
    %c0_16 = arith.constant 0 : index
    %c0_17 = arith.constant 0 : index
    %28 = vector.load %arg2[%c2, %c0_16, %c0_17] : memref<4x64x32xf32, #tpu.memory_space<vmem>>, vector<1x64x32xf32>
    %29 = vector.shape_cast %28 : vector<1x64x32xf32> to vector<64x32xf32>
    %cst_18 = arith.constant dense<0.000000e+00> : vector<64x128xf32>
    %30 = tpu.matmul %29, %3, %cst_18 {dimension_numbers = #tpu.dot_dimension_numbers<[1], [0], [0], [1], [0, 0, 1, 1], [], []>} : vector<64x32xf32>, vector<32x128xf32>, vector<64x128xf32> -> vector<64x128xf32>
    %c5_i32_19 = arith.constant 5 : i32
    %31 = vector.broadcast %c5_i32_19 : i32 to vector<64x128xi32>
    %32 = arith.cmpi sge, %4, %31 : vector<64x128xi32>
    %c14_i32 = arith.constant 14 : i32
    %33 = vector.broadcast %c14_i32 : i32 to vector<64x128xi32>
    %34 = arith.cmpi slt, %4, %33 : vector<64x128xi32>
    %35 = arith.andi %32, %34 : vector<64x128xi1>
    %cst_20 = arith.constant 0.000000e+00 : f32
    %36 = vector.broadcast %cst_20 : f32 to vector<64x128xf32>
    %37 = arith.select %35, %30, %36 : vector<64x128xi1>, vector<64x128xf32>
    %38 = arith.addf %27, %37 : vector<64x128xf32>
    %c3 = arith.constant 3 : index
    %c0_21 = arith.constant 0 : index
    %c0_22 = arith.constant 0 : index
    %39 = vector.load %arg2[%c3, %c0_21, %c0_22] : memref<4x64x32xf32, #tpu.memory_space<vmem>>, vector<1x64x32xf32>
    %40 = vector.shape_cast %39 : vector<1x64x32xf32> to vector<64x32xf32>
    %cst_23 = arith.constant dense<0.000000e+00> : vector<64x128xf32>
    %41 = tpu.matmul %40, %3, %cst_23 {dimension_numbers = #tpu.dot_dimension_numbers<[1], [0], [0], [1], [0, 0, 1, 1], [], []>} : vector<64x32xf32>, vector<32x128xf32>, vector<64x128xf32> -> vector<64x128xf32>
    %c14_i32_24 = arith.constant 14 : i32
    %42 = vector.broadcast %c14_i32_24 : i32 to vector<64x128xi32>
    %43 = arith.cmpi sge, %4, %42 : vector<64x128xi32>
    %c50_i32 = arith.constant 50 : i32
    %44 = vector.broadcast %c50_i32 : i32 to vector<64x128xi32>
    %45 = arith.cmpi slt, %4, %44 : vector<64x128xi32>
    %46 = arith.andi %43, %45 : vector<64x128xi1>
    %cst_25 = arith.constant 0.000000e+00 : f32
    %47 = vector.broadcast %cst_25 : f32 to vector<64x128xf32>
    %48 = arith.select %46, %41, %47 : vector<64x128xi1>, vector<64x128xf32>
    %49 = arith.addf %38, %48 : vector<64x128xf32>
    %c0_26 = arith.constant 0 : index
    %c0_27 = arith.constant 0 : index
    %50 = vector.load %arg3[%c0_26, %c0_27] : memref<64x32xf32, #tpu.memory_space<vmem>>, vector<64x32xf32>
    %cst_28 = arith.constant dense<0.000000e+00> : vector<64x256xf32>
    %51 = tpu.matmul %50, %1, %cst_28 {dimension_numbers = #tpu.dot_dimension_numbers<[1], [0], [0], [1], [0, 0, 1, 1], [], []>} : vector<64x32xf32>, vector<32x256xf32>, vector<64x256xf32> -> vector<64x256xf32>
    %c0_29 = arith.constant 0 : index
    %c0_30 = arith.constant 0 : index
    %52 = vector.load %arg5[%c0_29, %c0_30] : memref<128x256xf32, #tpu.memory_space<vmem>>, vector<128x256xf32>
    %cst_31 = arith.constant dense<0.000000e+00> : vector<64x256xf32>
    %53 = tpu.matmul %49, %52, %cst_31 {dimension_numbers = #tpu.dot_dimension_numbers<[1], [0], [0], [1], [0, 0, 1, 1], [], []>} : vector<64x128xf32>, vector<128x256xf32>, vector<64x256xf32> -> vector<64x256xf32>
    %54 = arith.addf %51, %53 : vector<64x256xf32>
    %cst_32 = arith.constant 0.000000e+00 : f32
    %55 = vector.broadcast %cst_32 : f32 to vector<64x256xf32>
    %56 = arith.maximumf %54, %55 : vector<64x256xf32>
    %c0_33 = arith.constant 0 : index
    %c0_34 = arith.constant 0 : index
    %c0_35 = arith.constant 0 : index
    %57 = vector.load %arg7[%c0_33, %c0_34, %c0_35] : memref<1x64x256xf32, #tpu.memory_space<vmem>>, vector<1x64x256xf32>
    %58 = vector.shape_cast %57 : vector<1x64x256xf32> to vector<64x256xf32>
    %59 = vector.shape_cast %56 : vector<64x256xf32> to vector<1x64x256xf32>
    tpu.vector_store %arg7[%c0_33, %c0_34, %c0_35], %59 {strides = array<i32>} : memref<1x64x256xf32, #tpu.memory_space<vmem>>, vector<1x64x256xf32>,
    return
  }
  func.func @transform_0(%arg0: i32) -> (i32, i32, i32) {
    %c0_i32 = arith.constant 0 : i32
    %c0_i32_0 = arith.constant 0 : i32
    %c0_i32_1 = arith.constant 0 : i32
    return %arg0, %c0_i32, %c0_i32_0 : i32, i32, i32
  }
  func.func @transform_1(%arg0: i32) -> (i32, i32, i32) {
    %c0_i32 = arith.constant 0 : i32
    %c0_i32_0 = arith.constant 0 : i32
    %c0_i32_1 = arith.constant 0 : i32
    %c0_i32_2 = arith.constant 0 : i32
    return %c0_i32, %c0_i32_0, %c0_i32_1 : i32, i32, i32
  }
  func.func @transform_2(%arg0: i32) -> (i32, i32) {
    %c0_i32 = arith.constant 0 : i32
    %c0_i32_0 = arith.constant 0 : i32
    %c0_i32_1 = arith.constant 0 : i32
    return %c0_i32, %c0_i32_0 : i32, i32
  }
  func.func @transform_3(%arg0: i32) -> (i32, i32) {
    %c0_i32 = arith.constant 0 : i32
    %c0_i32_0 = arith.constant 0 : i32
    %c0_i32_1 = arith.constant 0 : i32
    return %c0_i32, %c0_i32_0 : i32, i32
  }
  func.func @transform_4(%arg0: i32) -> (i32, i32) {
    %c0_i32 = arith.constant 0 : i32
    %c0_i32_0 = arith.constant 0 : i32
    %c0_i32_1 = arith.constant 0 : i32
    return %c0_i32, %c0_i32_0 : i32, i32
  }
  func.func @transform_5(%arg0: i32) -> (i32, i32) {
    %c0_i32 = arith.constant 0 : i32
    %c0_i32_0 = arith.constant 0 : i32
    %c0_i32_1 = arith.constant 0 : i32
    return %c0_i32, %c0_i32_0 : i32, i32
  }
  func.func @transform_6(%arg0: i32) -> (i32, i32, i32) {
    %c0_i32 = arith.constant 0 : i32
    %c0_i32_0 = arith.constant 0 : i32
    %c0_i32_1 = arith.constant 0 : i32
    return %arg0, %c0_i32, %c0_i32_0 : i32, i32, i32
  }
}

</mosaic_0001>

<llo_original>
// kernel: psp5_forward.1
$region0: #{psp5_forward.1}
  #allocation0 [shape = 'u32[]', space=smem, size = 0x4, offset = 0x4, fixed_abs, tag = 'smem constant byte address 0x4 - core index']
  #allocation1 [shape = 'u32[144,128]{1,0:T(1,128)}', space=vmem, size = 0x12000, scoped, tag = 'internal scratch']
  %s0 = inlined_call_operand.vmem [shape: f32[2,32,256], index: 0, kind: input, shape index: {}]
  %s1 = inlined_call_operand.vmem [shape: f32[4,64,32], index: 1, kind: input, shape index: {}]
  %s2 = inlined_call_operand.vmem [shape: f32[64,32], index: 2, kind: input, shape index: {}]
  %s3 = inlined_call_operand.vmem [shape: f32[256,128], index: 3, kind: input, shape index: {}]
  %s4 = inlined_call_operand.vmem [shape: f32[128,256], index: 4, kind: input, shape index: {}]
  %s5 = inlined_call_operand.vmem [shape: f32[64,128], index: 5, kind: input, shape index: {}]
  %s6 = inlined_call_operand.vmem [shape: f32[2,64,256], index: 6, kind: output, shape index: {}]
  %s7 = sld [smem:[#allocation0]]
  $region57: #{psp5_forward.1} parent=0
    _
  %s9 = ssub.s32 1, %s7
  %s10 = scalar_select 0, %s9, %s7
  loop: start=0, step=1, limit=4
  $region2: #{psp5_forward.1} parent=0 // loop_pre_header
    _
  $region3: #{psp5_forward.1} parent=0 // loop_header
    %s12 = sphi 0, %s16
    %p13 = scmp.ge.s32.totalorder %s12, 4
    %s22 = sphi 0, %s24
    %s25 = sphi 0, %s22
    %s26 = sphi 0, %s25
    %s42 = sphi 0, %s26
    %s46 = sphi 0, %s46
    %s48 = sphi 0, %s46
    %s49 = sphi 0, %s48
    %s63 = sphi 0, %s49
    %s67 = sphi 0, %s67
    %s69 = sphi 0, %s67
    %s70 = sphi 0, %s69
    %s84 = sphi 0, %s70
    %s88 = sphi 0, %s88
    %s90 = sphi 0, %s88
    %s91 = sphi 0, %s90
    %s105 = sphi 0, %s91
    %s109 = sphi 0, %s109
    %s111 = sphi 0, %s109
    %s112 = sphi 0, %s111
    %s126 = sphi 0, %s112
    %s130 = sphi 0, %s130
    %s132 = sphi 0, %s130
    %s133 = sphi 0, %s132
    %s147 = sphi 0, %s133
    %s153 = sphi 0, %s155
    %s156 = sphi 0, %s153
    %s157 = sphi 0, %s156
    %s173 = sphi 0, %s157
  $region4: #{psp5_forward.1} parent=0 // loop_header_branch
    %15 = sbr.rel (%p13) target = $region8
  $region5: #{psp5_forward.1} parent=0 // loop_body
    %s17 = ssub.s32 %s12, 1
    %s18 = ssub.s32 %s12, 2
    %s19 = sadd.s32 %s12, 1
    %s20 = ssub.s32 %s12, %s19
    %p21 = scmp.eq.s32.totalorder %s20, 0
    %s23 = sadd.s32 %s22, 1
    %s24 = scalar_select %p21, %s22, %s23
    %p27 = pneg %p21
    %p28 = scmp.eq.s32.totalorder %s12, 1
    %p29 = por %p27, %p28
    %p30 = scmp.ne.s32.totalorder %s22, %s25
    %p31 = scmp.eq.s32.totalorder %s12, 0
    %p32 = por %p30, %p31
    %p33 = scmp.ne.s32.totalorder %s22, %s25
    %p34 = scmp.eq.s32.totalorder %s17, 1
    %p35 = por %p33, %p34
    %p36 = scmp.ne.s32.totalorder %s25, %s26
    %p37 = scmp.eq.s32.totalorder %s17, 0
    %p38 = por %p36, %p37
    %p39 = scmp.ne.s32.totalorder %s25, %s26
    %p40 = scmp.eq.s32.totalorder %s18, 1
    %p41 = por %p39, %p40
    %p43 = scmp.ne.s32.totalorder %s26, %s42
    %p44 = scmp.eq.s32.totalorder %s18, 0
    %p45 = por %p43, %p44
    %s47 = sadd.s32 %s46, 1
    %p50 = scmp.eq.s32.totalorder %s12, 1
    %p51 = scmp.ne.s32.totalorder %s46, %s48
    %p52 = scmp.eq.s32.totalorder %s12, 0
    %p53 = por %p51, %p52
    %p54 = scmp.ne.s32.totalorder %s46, %s48
    %p55 = scmp.eq.s32.totalorder %s17, 1
    %p56 = por %p54, %p55
    %p57 = scmp.ne.s32.totalorder %s48, %s49
    %p58 = scmp.eq.s32.totalorder %s17, 0
    %p59 = por %p57, %p58
    %p60 = scmp.ne.s32.totalorder %s48, %s49
    %p61 = scmp.eq.s32.totalorder %s18, 1
    %p62 = por %p60, %p61
    %p64 = scmp.ne.s32.totalorder %s49, %s63
    %p65 = scmp.eq.s32.totalorder %s18, 0
    %p66 = por %p64, %p65
    %s68 = sadd.s32 %s67, 1
    %p71 = scmp.eq.s32.totalorder %s12, 1
    %p72 = scmp.ne.s32.totalorder %s67, %s69
    %p73 = scmp.eq.s32.totalorder %s12, 0
    %p74 = por %p72, %p73
    %p75 = scmp.ne.s32.totalorder %s67, %s69
    %p76 = scmp.eq.s32.totalorder %s17, 1
    %p77 = por %p75, %p76
    %p78 = scmp.ne.s32.totalorder %s69, %s70
    %p79 = scmp.eq.s32.totalorder %s17, 0
    %p80 = por %p78, %p79
    %p81 = scmp.ne.s32.totalorder %s69, %s70
    %p82 = scmp.eq.s32.totalorder %s18, 1
    %p83 = por %p81, %p82
    %p85 = scmp.ne.s32.totalorder %s70, %s84
    %p86 = scmp.eq.s32.totalorder %s18, 0
    %p87 = por %p85, %p86
    %s89 = sadd.s32 %s88, 1
    %p92 = scmp.eq.s32.totalorder %s12, 1
    %p93 = scmp.ne.s32.totalorder %s88, %s90
    %p94 = scmp.eq.s32.totalorder %s12, 0
    %p95 = por %p93, %p94
    %p96 = scmp.ne.s32.totalorder %s88, %s90
    %p97 = scmp.eq.s32.totalorder %s17, 1
    %p98 = por %p96, %p97
    %p99 = scmp.ne.s32.totalorder %s90, %s91
    %p100 = scmp.eq.s32.totalorder %s17, 0
    %p101 = por %p99, %p100
    %p102 = scmp.ne.s32.totalorder %s90, %s91
    %p103 = scmp.eq.s32.totalorder %s18, 1
    %p104 = por %p102, %p103
    %p106 = scmp.ne.s32.totalorder %s91, %s105
    %p107 = scmp.eq.s32.totalorder %s18, 0
    %p108 = por %p106, %p107
    %s110 = sadd.s32 %s109, 1
    %p113 = scmp.eq.s32.totalorder %s12, 1
    %p114 = scmp.ne.s32.totalorder %s109, %s111
    %p115 = scmp.eq.s32.totalorder %s12, 0
    %p116 = por %p114, %p115
    %p117 = scmp.ne.s32.totalorder %s109, %s111
    %p118 = scmp.eq.s32.totalorder %s17, 1
    %p119 = por %p117, %p118
    %p120 = scmp.ne.s32.totalorder %s111, %s112
    %p121 = scmp.eq.s32.totalorder %s17, 0
    %p122 = por %p120, %p121
    %p123 = scmp.ne.s32.totalorder %s111, %s112
    %p124 = scmp.eq.s32.totalorder %s18, 1
    %p125 = por %p123, %p124
    %p127 = scmp.ne.s32.totalorder %s112, %s126
    %p128 = scmp.eq.s32.totalorder %s18, 0
    %p129 = por %p127, %p128
    %s131 = sadd.s32 %s130, 1
    %p134 = scmp.eq.s32.totalorder %s12, 1
    %p135 = scmp.ne.s32.totalorder %s130, %s132
    %p136 = scmp.eq.s32.totalorder %s12, 0
    %p137 = por %p135, %p136
    %p138 = scmp.ne.s32.totalorder %s130, %s132
    %p139 = scmp.eq.s32.totalorder %s17, 1
    %p140 = por %p138, %p139
    %p141 = scmp.ne.s32.totalorder %s132, %s133
    %p142 = scmp.eq.s32.totalorder %s17, 0
    %p143 = por %p141, %p142
    %p144 = scmp.ne.s32.totalorder %s132, %s133
    %p145 = scmp.eq.s32.totalorder %s18, 1
    %p146 = por %p144, %p145
    %p148 = scmp.ne.s32.totalorder %s133, %s147
    %p149 = scmp.eq.s32.totalorder %s18, 0
    %p150 = por %p148, %p149
    %s151 = ssub.s32 %s12, %s19
    %p152 = scmp.eq.s32.totalorder %s151, 0
    %s154 = sadd.s32 %s153, 1
    %s155 = scalar_select %p152, %s153, %s154
    %p158 = pneg %p152
    %p159 = scmp.eq.s32.totalorder %s12, 1
    %p160 = por %p158, %p159
    %p161 = scmp.ne.s32.totalorder %s153, %s156
    %p162 = scmp.eq.s32.totalorder %s12, 0
    %p163 = por %p161, %p162
    %p164 = scmp.ne.s32.totalorder %s153, %s156
    %p165 = scmp.eq.s32.totalorder %s17, 1
    %p166 = por %p164, %p165
    %p167 = scmp.ne.s32.totalorder %s156, %s157
    %p168 = scmp.eq.s32.totalorder %s17, 0
    %p169 = por %p167, %p168
    %p170 = scmp.ne.s32.totalorder %s156, %s157
    %p171 = scmp.eq.s32.totalorder %s18, 1
    %p172 = por %p170, %p171
    %p174 = scmp.ne.s32.totalorder %s157, %s173
    %p175 = scmp.eq.s32.totalorder %s18, 0
    %p176 = por %p174, %p175
    %p177 = scmp.le.s32.totalorder 1, %s12
    %p178 = scmp.lt.s32.totalorder %s12, 3
    %p179 = pnand %p177, %p178
    %p180 = pneg %p179
    // Predicated region
    $region9: #{psp5_forward.1} parent=5 // pred_check
      _
    $region10: #{psp5_forward.1} parent=5 // pred_check_branch
      %182 = sbr.rel (%p179) target = $region12
    $region11: #{psp5_forward.1} parent=5 // pred_region
      %s183 = ssub.s32 %s12, 1
      // Predicated region
      $region13: #{psp5_forward.1} parent=11 // pred_check
        %p184 = pneg %p59
      $region14: #{psp5_forward.1} parent=11 // pred_check_branch
        %186 = sbr.rel (%p184) target = $region16
      $region15: #{psp5_forward.1} parent=11 // pred_region
        _
      $region16: #{psp5_forward.1} parent=11 // pred_fallthru
        _
      // Predicated region
      $region17: #{psp5_forward.1} parent=11 // pred_check
        %p187 = pneg %p80
      $region18: #{psp5_forward.1} parent=11 // pred_check_branch
        %189 = sbr.rel (%p187) target = $region20
      $region19: #{psp5_forward.1} parent=11 // pred_region
        _
      $region20: #{psp5_forward.1} parent=11 // pred_fallthru
        _
      // Predicated region
      $region21: #{psp5_forward.1} parent=11 // pred_check
        %p190 = pneg %p101
      $region22: #{psp5_forward.1} parent=11 // pred_check_branch
        %192 = sbr.rel (%p190) target = $region24
      $region23: #{psp5_forward.1} parent=11 // pred_region
        _
      $region24: #{psp5_forward.1} parent=11 // pred_fallthru
        _
      // Predicated region
      $region25: #{psp5_forward.1} parent=11 // pred_check
        %p193 = pneg %p122
      $region26: #{psp5_forward.1} parent=11 // pred_check_branch
        %195 = sbr.rel (%p193) target = $region28
      $region27: #{psp5_forward.1} parent=11 // pred_region
        _
      $region28: #{psp5_forward.1} parent=11 // pred_fallthru
        _
      // Predicated region
      $region29: #{psp5_forward.1} parent=11 // pred_check
        %p196 = pneg %p143
      $region30: #{psp5_forward.1} parent=11 // pred_check_branch
        %198 = sbr.rel (%p196) target = $region32
      $region31: #{psp5_forward.1} parent=11 // pred_region
        _
      $region32: #{psp5_forward.1} parent=11 // pred_fallthru
        _
    $region12: #{psp5_forward.1} parent=5 // pred_fallthru
      _
    %p199 = scmp.lt.s32.totalorder %s12, 2
    // Predicated region
    $region33: #{psp5_forward.1} parent=5 // pred_check
      %p200 = pneg %p199
    $region34: #{psp5_forward.1} parent=5 // pred_check_branch
      %202 = sbr.rel (%p200) target = $region36
    $region35: #{psp5_forward.1} parent=5 // pred_region
      // Predicated region
      $region37: #{psp5_forward.1} parent=35 // pred_check
        %p203 = pneg %p32
      $region38: #{psp5_forward.1} parent=35 // pred_check_branch
        %205 = sbr.rel (%p203) target = $region40
      $region39: #{psp5_forward.1} parent=35 // pred_region
        %p206 = scmp.lt.s32.totalorder %s12, 1
        %s207 = scalar_select %p206, %s12, 1
        %s208 = smul.addr %s207, 8
        %s209 = smul.addr %s208, 8
        %s210 = scalar_lea.vmem %s0, %s209
      $region40: #{psp5_forward.1} parent=35 // pred_fallthru
        _
    $region36: #{psp5_forward.1} parent=5 // pred_fallthru
      _
    %p211 = scmp.le.s32.totalorder 1, %s12
    %p212 = scmp.lt.s32.totalorder %s12, 3
    %p213 = pnand %p211, %p212
    %p214 = pneg %p213
    // Predicated region
    $region41: #{psp5_forward.1} parent=5 // pred_check
      _
    $region42: #{psp5_forward.1} parent=5 // pred_check_branch
      %216 = sbr.rel (%p213) target = $region44
    $region43: #{psp5_forward.1} parent=5 // pred_region
      %s217 = ssub.s32 %s12, 1
      %p218 = scmp.lt.s32.totalorder %s17, 1
      %s219 = scalar_select %p218, %s17, 1
      %s220 = smul.addr %s219, 8
      %s221 = smul.addr %s220, 8
      %s222 = scalar_lea.vmem %s0, %s221
      %p223 = pneg %p38
      %p224 = pneg %p35
      %p225 = pneg %p59
      %p226 = pneg %p56
      %p227 = pneg %p80
      %p228 = pneg %p77
      %p229 = pneg %p101
      %p230 = pneg %p98
      %p231 = pneg %p122
      %p232 = pneg %p119
      %p233 = pneg %p143
      %p234 = pneg %p140
      %p235 = pneg %p169
      %p236 = pneg %p166
      %p237 = scmp.lt.s32.totalorder %s17, 1
      %s238 = scalar_select %p237, %s17, 1
      %s239 = smul.addr %s238, 16
      %s240 = smul.addr %s239, 8
      %s241 = scalar_lea.vmem %s6, %s240
      %p242 = scmp.lt.s32.totalorder %s17, 1
      %s243 = scalar_select %p242, %s17, 1
      %s244 = smul.addr %s243, 8
      %s245 = smul.addr %s244, 8
      %s246 = scalar_lea.vmem %s0, %s245
      %p247 = scmp.lt.s32.totalorder %s17, 1
      %s248 = scalar_select %p247, %s17, 1
      %s249 = smul.addr %s248, 16
      %s250 = smul.addr %s249, 8
      %s251 = scalar_lea.vmem %s6, %s250
      %v252 = vld [vmem:[%s246] sm:$0xff]
      %v253 = vld [vmem:[%s246 + $0x8] sm:$0xff]
      %v254 = vld [vmem:[%s246 + $0x10] sm:$0xff]
      %v255 = vld [vmem:[%s246 + $0x18] sm:$0xff]
      %v256 = vld [vmem:[%s246 + $0x20] sm:$0xff]
      %v257 = vld [vmem:[%s246 + $0x28] sm:$0xff]
      %v258 = vld [vmem:[%s246 + $0x30] sm:$0xff]
      %v259 = vld [vmem:[%s246 + $0x38] sm:$0xff]
      %v260 = vld [vmem:[%s3] sm:$0xff]
      %v261 = vld [vmem:[%s3 + $0x8] sm:$0xff]
      %v262 = vld [vmem:[%s3 + $0x10] sm:$0xff]
      %v263 = vld [vmem:[%s3 + $0x18] sm:$0xff]
      %v264 = vld [vmem:[%s3 + $0x20] sm:$0xff]
      %v265 = vld [vmem:[%s3 + $0x28] sm:$0xff]
      %v266 = vld [vmem:[%s3 + $0x30] sm:$0xff]
      %v267 = vld [vmem:[%s3 + $0x38] sm:$0xff]
      %v268 = vld [vmem:[%s3 + $0x40] sm:$0xff]
      %v269 = vld [vmem:[%s3 + $0x48] sm:$0xff]
      %v270 = vld [vmem:[%s3 + $0x50] sm:$0xff]
      %v271 = vld [vmem:[%s3 + $0x58] sm:$0xff]
      %v272 = vld [vmem:[%s3 + $0x60] sm:$0xff]
      %v273 = vld [vmem:[%s3 + $0x68] sm:$0xff]
      %v274 = vld [vmem:[%s3 + $0x70] sm:$0xff]
      %v275 = vld [vmem:[%s3 + $0x78] sm:$0xff]
      %v276 = vld [vmem:[%s3 + $0x80] sm:$0xff]
      %v277 = vld [vmem:[%s3 + $0x88] sm:$0xff]
      %v278 = vld [vmem:[%s3 + $0x90] sm:$0xff]
      %v279 = vld [vmem:[%s3 + $0x98] sm:$0xff]
      %v280 = vld [vmem:[%s3 + $0xa0] sm:$0xff]
      %v281 = vld [vmem:[%s3 + $0xa8] sm:$0xff]
      %v282 = vld [vmem:[%s3 + $0xb0] sm:$0xff]
      %v283 = vld [vmem:[%s3 + $0xb8] sm:$0xff]
      %v284 = vld [vmem:[%s3 + $0xc0] sm:$0xff]
      %v285 = vld [vmem:[%s3 + $0xc8] sm:$0xff]
      %v286 = vld [vmem:[%s3 + $0xd0] sm:$0xff]
      %v287 = vld [vmem:[%s3 + $0xd8] sm:$0xff]
      %v288 = vld [vmem:[%s3 + $0xe0] sm:$0xff]
      %v289 = vld [vmem:[%s3 + $0xe8] sm:$0xff]
      %v290 = vld [vmem:[%s3 + $0xf0] sm:$0xff]
      %v291 = vld [vmem:[%s3 + $0xf8] sm:$0xff]
      %292 = vmatprep.subr.mxu0 0.0
      %293 = vmatpush1.msra.mxu0 %v260
      %294 = vmatprep.subr.mxu0 0.0
      %295 = vmatpush1.msra.mxu0 %v261
      %296 = vmatprep.subr.mxu0 0.0
      %297 = vmatpush1.msra.mxu0 %v262
      %298 = vmatprep.subr.mxu0 0.0
      %299 = vmatpush1.msra.mxu0 %v263
      %300 = vmatprep.subr.mxu0 0.0
      %301 = vmatpush1.msra.mxu0 %v264
      %302 = vmatprep.subr.mxu0 0.0
      %303 = vmatpush1.msra.mxu0 %v265
      %304 = vmatprep.subr.mxu0 0.0
      %305 = vmatpush1.msra.mxu0 %v266
      %306 = vmatprep.subr.mxu0 0.0
      %307 = vmatpush1.msra.mxu0 %v267
      %308 = vmatprep.subr.mxu0 0.0
      %309 = vmatpush1.msra.mxu0 %v268
      %310 = vmatprep.subr.mxu0 0.0
      %311 = vmatpush1.msra.mxu0 %v269
      %312 = vmatprep.subr.mxu0 0.0
      %313 = vmatpush1.msra.mxu0 %v270
      %314 = vmatprep.subr.mxu0 0.0
      %315 = vmatpush1.msra.mxu0 %v271
      %316 = vmatprep.subr.mxu0 0.0
      %317 = vmatpush1.msra.mxu0 %v272
      %318 = vmatprep.subr.mxu0 0.0
      %319 = vmatpush1.msra.mxu0 %v273
      %320 = vmatprep.subr.mxu0 0.0
      %321 = vmatpush1.msra.mxu0 %v274
      %322 = vmatprep.subr.mxu0 0.0
      %323 = vmatpush1.msra.mxu0 %v275
      %324 = vmatprep.subr.mxu0 0.0
      %325 = vmatpush1.msra.mxu0 %v276
      %326 = vmatprep.subr.mxu0 0.0
      %327 = vmatpush1.msra.mxu0 %v277
      %328 = vmatprep.subr.mxu0 0.0
      %329 = vmatpush1.msra.mxu0 %v278
      %330 = vmatprep.subr.mxu0 0.0
      %331 = vmatpush1.msra.mxu0 %v279
      %332 = vmatprep.subr.mxu0 0.0
      %333 = vmatpush1.msra.mxu0 %v280
      %334 = vmatprep.subr.mxu0 0.0
      %335 = vmatpush1.msra.mxu0 %v281
      %336 = vmatprep.subr.mxu0 0.0
      %337 = vmatpush1.msra.mxu0 %v282
      %338 = vmatprep.subr.mxu0 0.0
      %339 = vmatpush1.msra.mxu0 %v283
      %340 = vmatprep.subr.mxu0 0.0
      %341 = vmatpush1.msra.mxu0 %v284
      %342 = vmatprep.subr.mxu0 0.0
      %343 = vmatpush1.msra.mxu0 %v285
      %344 = vmatprep.subr.mxu0 0.0
      %345 = vmatpush1.msra.mxu0 %v286
      %346 = vmatprep.subr.mxu0 0.0
      %347 = vmatpush1.msra.mxu0 %v287
      %348 = vmatprep.subr.mxu0 0.0
      %349 = vmatpush1.msra.mxu0 %v288
      %350 = vmatprep.subr.mxu0 0.0
      %351 = vmatpush1.msra.mxu0 %v289
      %352 = vmatprep.subr.mxu0 0.0
      %353 = vmatpush1.msra.mxu0 %v290
      %354 = vmatprep.subr.mxu0 0.0
      %355 = vmatpush1.msra.mxu0 %v291
      %356 = vmatprep.mubr.f32.mxu0 %v253
      %357 = vmatmul.mubr.f32.gmra.mrb[0].mxu0 %v252
      %v358 = vpop.f32.mrb[0].mxu0
      %v359 = vadd.f32 0.0, %v358
      %v360 = vpop.f32.mrb[0].mxu0
      %361 = vmatprep.mubr.f32.mxu0 %v255
      %362 = vmatmul.mubr.f32.gmra.mrb[0].mxu0 %v254
      %v363 = vpop.f32.mrb[0].mxu0
      %v364 = vadd.f32 0.0, %v363
      %v365 = vpop.f32.mrb[0].mxu0
      %366 = vmatprep.mubr.f32.mxu0 %v257
      %367 = vmatmul.mubr.f32.gmra.mrb[0].mxu0 %v256
      %v368 = vpop.f32.mrb[0].mxu0
      %v369 = vadd.f32 0.0, %v368
      %v370 = vpop.f32.mrb[0].mxu0
      %371 = vmatprep.mubr.f32.mxu0 %v259
      %372 = vmatmul.mubr.f32.gmra.mrb[0].mxu0 %v258
      %v373 = vpop.f32.mrb[0].mxu0
      %v374 = vadd.f32 0.0, %v373
      %v375 = vpop.f32.mrb[0].mxu0
      %376 = vdwg.mxu0
      %v377 = vlaneseq
      %v378 = vand.u32 %v377, 127
      %v379 = vld [vmem:[%s5] sm:$0xff]
      %v380 = vld [vmem:[%s5 + $0x8] sm:$0xff]
      %v381 = vld [vmem:[%s5 + $0x10] sm:$0xff]
      %v382 = vld [vmem:[%s5 + $0x18] sm:$0xff]
      %v383 = vld [vmem:[%s5 + $0x20] sm:$0xff]
      %v384 = vld [vmem:[%s5 + $0x28] sm:$0xff]
      %v385 = vld [vmem:[%s5 + $0x30] sm:$0xff]
      %v386 = vld [vmem:[%s5 + $0x38] sm:$0xff]
      %v387 = vld [vmem:[%s1] sm:$0xff]
      %v388 = vld [vmem:[%s1 + $0x8] sm:$0xff]
      %v389 = vld [vmem:[%s1 + $0x10] sm:$0xff]
      %v390 = vld [vmem:[%s1 + $0x18] sm:$0xff]
      %v391 = vld [vmem:[%s1 + $0x20] sm:$0xff]
      %v392 = vld [vmem:[%s1 + $0x28] sm:$0xff]
      %v393 = vld [vmem:[%s1 + $0x30] sm:$0xff]
      %v394 = vld [vmem:[%s1 + $0x38] sm:$0xff]
      %vm395 = vcmask 261120
      %v397 = vsel %vm395, %v387, 0
      %v400 = vsel %vm395, %v388, 0
      %v403 = vsel %vm395, %v389, 0
      %v406 = vsel %vm395, %v390, 0
      %v409 = vsel %vm395, %v391, 0
      %v412 = vsel %vm395, %v392, 0
      %v415 = vsel %vm395, %v393, 0
      %v418 = vsel %vm395, %v394, 0
      %420 = vmatprep.subr.mxu0 0.0
      %421 = vmatpush1.msra.mxu0 %v359
      %422 = vmatprep.subr.mxu0 0.0
      %423 = vmatpush1.msra.mxu0 %v364
      %424 = vmatprep.subr.mxu0 0.0
      %425 = vmatpush1.msra.mxu0 %v369
      %426 = vmatprep.subr.mxu0 0.0
      %427 = vmatpush1.msra.mxu0 %v374
      %428 = vmatprep.subr.mxu0 0.0
      %429 = vmatpush1.msra.mxu0 0.0
      %430 = vmatprep.subr.mxu0 0.0
      %431 = vmatpush1.msra.mxu0 0.0
      %432 = vmatprep.subr.mxu0 0.0
      %433 = vmatpush1.msra.mxu0 0.0
      %434 = vmatprep.subr.mxu0 0.0
      %435 = vmatpush1.msra.mxu0 0.0
      %436 = vmatprep.subr.mxu0 0.0
      %437 = vmatpush1.msra.mxu0 0.0
      %438 = vmatprep.subr.mxu0 0.0
      %439 = vmatpush1.msra.mxu0 0.0
      %440 = vmatprep.subr.mxu0 0.0
      %441 = vmatpush1.msra.mxu0 0.0
      %442 = vmatprep.subr.mxu0 0.0
      %443 = vmatpush1.msra.mxu0 0.0
      %444 = vmatprep.subr.mxu0 0.0
      %445 = vmatpush1.msra.mxu0 0.0
      %446 = vmatprep.subr.mxu0 0.0
      %447 = vmatpush1.msra.mxu0 0.0
      %448 = vmatprep.subr.mxu0 0.0
      %449 = vmatpush1.msra.mxu0 0.0
      %450 = vmatprep.subr.mxu0 0.0
      %451 = vmatpush1.msra.mxu0 0.0
      %452 = vmatprep.subr.mxu0 0.0
      %453 = vmatpush1.msra.mxu0 0.0
      %454 = vmatprep.subr.mxu0 0.0
      %455 = vmatpush1.msra.mxu0 0.0
      %456 = vmatprep.subr.mxu0 0.0
      %457 = vmatpush1.msra.mxu0 0.0
      %458 = vmatprep.subr.mxu0 0.0
      %459 = vmatpush1.msra.mxu0 0.0
      %460 = vmatprep.subr.mxu0 0.0
      %461 = vmatpush1.msra.mxu0 0.0
      %462 = vmatprep.subr.mxu0 0.0
      %463 = vmatpush1.msra.mxu0 0.0
      %464 = vmatprep.subr.mxu0 0.0
      %465 = vmatpush1.msra.mxu0 0.0
      %466 = vmatprep.subr.mxu0 0.0
      %467 = vmatpush1.msra.mxu0 0.0
      %468 = vmatprep.subr.mxu0 0.0
      %469 = vmatpush1.msra.mxu0 0.0
      %470 = vmatprep.subr.mxu0 0.0
      %471 = vmatpush1.msra.mxu0 0.0
      %472 = vmatprep.subr.mxu0 0.0
      %473 = vmatpush1.msra.mxu0 0.0
      %474 = vmatprep.subr.mxu0 0.0
      %475 = vmatpush1.msra.mxu0 0.0
      %476 = vmatprep.subr.mxu0 0.0
      %477 = vmatpush1.msra.mxu0 0.0
      %478 = vmatprep.subr.mxu0 0.0
      %479 = vmatpush1.msra.mxu0 0.0
      %480 = vmatprep.subr.mxu0 0.0
      %481 = vmatpush1.msra.mxu0 0.0
      %482 = vmatprep.subr.mxu0 0.0
      %483 = vmatpush1.msra.mxu0 0.0
      %484 = vmatprep.mubr.f32.mxu0 0.0
      %485 = vmatmul.mubr.f32.gmra.mrb[0].mxu0 %v397
      %v486 = vpop.f32.mrb[0].mxu0
      %v487 = vadd.f32 0.0, %v486
      %v488 = vpop.f32.mrb[0].mxu0
      %489 = vmatprep.mubr.f32.mxu0 0.0
      %490 = vmatmul.mubr.f32.gmra.mrb[0].mxu0 %v400
      %v491 = vpop.f32.mrb[0].mxu0
      %v492 = vadd.f32 0.0, %v491
      %v493 = vpop.f32.mrb[0].mxu0
      %494 = vmatprep.mubr.f32.mxu0 0.0
      %495 = vmatmul.mubr.f32.gmra.mrb[0].mxu0 %v403
      %v496 = vpop.f32.mrb[0].mxu0
      %v497 = vadd.f32 0.0, %v496
      %v498 = vpop.f32.mrb[0].mxu0
      %499 = vmatprep.mubr.f32.mxu0 0.0
      %500 = vmatmul.mubr.f32.gmra.mrb[0].mxu0 %v406
      %v501 = vpop.f32.mrb[0].mxu0
      %v502 = vadd.f32 0.0, %v501
      %v503 = vpop.f32.mrb[0].mxu0
      %504 = vmatprep.mubr.f32.mxu0 0.0
      %505 = vmatmul.mubr.f32.gmra.mrb[0].mxu0 %v409
      %v506 = vpop.f32.mrb[0].mxu0
      %v507 = vadd.f32 0.0, %v506
      %v508 = vpop.f32.mrb[0].mxu0
      %509 = vmatprep.mubr.f32.mxu0 0.0
      %510 = vmatmul.mubr.f32.gmra.mrb[0].mxu0 %v412
      %v511 = vpop.f32.mrb[0].mxu0
      %v512 = vadd.f32 0.0, %v511
      %v513 = vpop.f32.mrb[0].mxu0
      %514 = vmatprep.mubr.f32.mxu0 0.0
      %515 = vmatmul.mubr.f32.gmra.mrb[0].mxu0 %v415
      %v516 = vpop.f32.mrb[0].mxu0
      %v517 = vadd.f32 0.0, %v516
      %v518 = vpop.f32.mrb[0].mxu0
      %519 = vmatprep.mubr.f32.mxu0 0.0
      %520 = vmatmul.mubr.f32.gmra.mrb[0].mxu0 %v418
      %v521 = vpop.f32.mrb[0].mxu0
      %v522 = vadd.f32 0.0, %v521
      %v523 = vpop.f32.mrb[0].mxu0
      %524 = vdwg.mxu0
      %vm525 = vcmp.ge.s32.totalorder %v378, 0
      %vm526 = vcmp.lt.s32.totalorder %v378, 1
      %vm527 = vmand %vm525, %vm526
      %v528 = vsel %vm527, %v487, 0.0
      %v529 = vsel %vm527, %v492, 0.0
      %v530 = vsel %vm527, %v497, 0.0
      %v531 = vsel %vm527, %v502, 0.0
      %v532 = vsel %vm527, %v507, 0.0
      %v533 = vsel %vm527, %v512, 0.0
      %v534 = vsel %vm527, %v517, 0.0
      %v535 = vsel %vm527, %v522, 0.0
      %v536 = vadd.f32 %v379, %v528
      %v537 = vadd.f32 %v380, %v529
      %v538 = vadd.f32 %v381, %v530
      %v539 = vadd.f32 %v382, %v531
      %v540 = vadd.f32 %v383, %v532
      %v541 = vadd.f32 %v384, %v533
      %v542 = vadd.f32 %v385, %v534
      %v543 = vadd.f32 %v386, %v535
      %s544 = scalar_lea.vmem %s1, 64
      %v545 = vld [vmem:[%s544] sm:$0xff]
      %v546 = vld [vmem:[%s544 + $0x8] sm:$0xff]
      %v547 = vld [vmem:[%s544 + $0x10] sm:$0xff]
      %v548 = vld [vmem:[%s544 + $0x18] sm:$0xff]
      %v549 = vld [vmem:[%s544 + $0x20] sm:$0xff]
      %v550 = vld [vmem:[%s544 + $0x28] sm:$0xff]
      %v551 = vld [vmem:[%s544 + $0x30] sm:$0xff]
      %v552 = vld [vmem:[%s544 + $0x38] sm:$0xff]
      %v554 = vsel %vm395, %v545, 0
      %v557 = vsel %vm395, %v546, 0
      %v560 = vsel %vm395, %v547, 0
      %v563 = vsel %vm395, %v548, 0
      %v566 = vsel %vm395, %v549, 0
      %v569 = vsel %vm395, %v550, 0
      %v572 = vsel %vm395, %v551, 0
      %v575 = vsel %vm395, %v552, 0
      %577 = vmatprep.subr.mxu0 0.0
      %578 = vmatpush1.msra.mxu0 %v359
      %579 = vmatprep.subr.mxu0 0.0
      %580 = vmatpush1.msra.mxu0 %v364
      %581 = vmatprep.subr.mxu0 0.0
      %582 = vmatpush1.msra.mxu0 %v369
      %583 = vmatprep.subr.mxu0 0.0
      %584 = vmatpush1.msra.mxu0 %v374
      %585 = vmatprep.subr.mxu0 0.0
      %586 = vmatpush1.msra.mxu0 0.0
      %587 = vmatprep.subr.mxu0 0.0
      %588 = vmatpush1.msra.mxu0 0.0
      %589 = vmatprep.subr.mxu0 0.0
      %590 = vmatpush1.msra.mxu0 0.0
      %591 = vmatprep.subr.mxu0 0.0
      %592 = vmatpush1.msra.mxu0 0.0
      %593 = vmatprep.subr.mxu0 0.0
      %594 = vmatpush1.msra.mxu0 0.0
      %595 = vmatprep.subr.mxu0 0.0
      %596 = vmatpush1.msra.mxu0 0.0
      %597 = vmatprep.subr.mxu0 0.0
      %598 = vmatpush1.msra.mxu0 0.0
      %599 = vmatprep.subr.mxu0 0.0
      %600 = vmatpush1.msra.mxu0 0.0
      %601 = vmatprep.subr.mxu0 0.0
      %602 = vmatpush1.msra.mxu0 0.0
      %603 = vmatprep.subr.mxu0 0.0
      %604 = vmatpush1.msra.mxu0 0.0
      %605 = vmatprep.subr.mxu0 0.0
      %606 = vmatpush1.msra.mxu0 0.0
      %607 = vmatprep.subr.mxu0 0.0
      %608 = vmatpush1.msra.mxu0 0.0
      %609 = vmatprep.subr.mxu0 0.0
      %610 = vmatpush1.msra.mxu0 0.0
      %611 = vmatprep.subr.mxu0 0.0
      %612 = vmatpush1.msra.mxu0 0.0
      %613 = vmatprep.subr.mxu0 0.0
      %614 = vmatpush1.msra.mxu0 0.0
      %615 = vmatprep.subr.mxu0 0.0
      %616 = vmatpush1.msra.mxu0 0.0
      %617 = vmatprep.subr.mxu0 0.0
      %618 = vmatpush1.msra.mxu0 0.0
      %619 = vmatprep.subr.mxu0 0.0
      %620 = vmatpush1.msra.mxu0 0.0
      %621 = vmatprep.subr.mxu0 0.0
      %622 = vmatpush1.msra.mxu0 0.0
      %623 = vmatprep.subr.mxu0 0.0
      %624 = vmatpush1.msra.mxu0 0.0
      %625 = vmatprep.subr.mxu0 0.0
      %626 = vmatpush1.msra.mxu0 0.0
      %627 = vmatprep.subr.mxu0 0.0
      %628 = vmatpush1.msra.mxu0 0.0
      %629 = vmatprep.subr.mxu0 0.0
      %630 = vmatpush1.msra.mxu0 0.0
      %631 = vmatprep.subr.mxu0 0.0
      %632 = vmatpush1.msra.mxu0 0.0
      %633 = vmatprep.subr.mxu0 0.0
      %634 = vmatpush1.msra.mxu0 0.0
      %635 = vmatprep.subr.mxu0 0.0
      %636 = vmatpush1.msra.mxu0 0.0
      %637 = vmatprep.subr.mxu0 0.0
      %638 = vmatpush1.msra.mxu0 0.0
      %639 = vmatprep.subr.mxu0 0.0
      %640 = vmatpush1.msra.mxu0 0.0
      %641 = vmatprep.mubr.f32.mxu0 0.0
      %642 = vmatmul.mubr.f32.gmra.mrb[0].mxu0 %v554
      %v643 = vpop.f32.mrb[0].mxu0
      %v644 = vadd.f32 0.0, %v643
      %v645 = vpop.f32.mrb[0].mxu0
      %646 = vmatprep.mubr.f32.mxu0 0.0
      %647 = vmatmul.mubr.f32.gmra.mrb[0].mxu0 %v557
      %v648 = vpop.f32.mrb[0].mxu0
      %v649 = vadd.f32 0.0, %v648
      %v650 = vpop.f32.mrb[0].mxu0
      %651 = vmatprep.mubr.f32.mxu0 0.0
      %652 = vmatmul.mubr.f32.gmra.mrb[0].mxu0 %v560
      %v653 = vpop.f32.mrb[0].mxu0
      %v654 = vadd.f32 0.0, %v653
      %v655 = vpop.f32.mrb[0].mxu0
      %656 = vmatprep.mubr.f32.mxu0 0.0
      %657 = vmatmul.mubr.f32.gmra.mrb[0].mxu0 %v563
      %v658 = vpop.f32.mrb[0].mxu0
      %v659 = vadd.f32 0.0, %v658
      %v660 = vpop.f32.mrb[0].mxu0
      %661 = vmatprep.mubr.f32.mxu0 0.0
      %662 = vmatmul.mubr.f32.gmra.mrb[0].mxu0 %v566
      %v663 = vpop.f32.mrb[0].mxu0
      %v664 = vadd.f32 0.0, %v663
      %v665 = vpop.f32.mrb[0].mxu0
      %666 = vmatprep.mubr.f32.mxu0 0.0
      %667 = vmatmul.mubr.f32.gmra.mrb[0].mxu0 %v569
      %v668 = vpop.f32.mrb[0].mxu0
      %v669 = vadd.f32 0.0, %v668
      %v670 = vpop.f32.mrb[0].mxu0
      %671 = vmatprep.mubr.f32.mxu0 0.0
      %672 = vmatmul.mubr.f32.gmra.mrb[0].mxu0 %v572
      %v673 = vpop.f32.mrb[0].mxu0
      %v674 = vadd.f32 0.0, %v673
      %v675 = vpop.f32.mrb[0].mxu0
      %676 = vmatprep.mubr.f32.mxu0 0.0
      %677 = vmatmul.mubr.f32.gmra.mrb[0].mxu0 %v575
      %v678 = vpop.f32.mrb[0].mxu0
      %v679 = vadd.f32 0.0, %v678
      %v680 = vpop.f32.mrb[0].mxu0
      %681 = vdwg.mxu0
      %vm682 = vcmp.ge.s32.totalorder %v378, 1
      %vm683 = vcmp.lt.s32.totalorder %v378, 5
      %vm684 = vmand %vm682, %vm683
      %v685 = vsel %vm684, %v644, 0.0
      %v686 = vsel %vm684, %v649, 0.0
      %v687 = vsel %vm684, %v654, 0.0
      %v688 = vsel %vm684, %v659, 0.0
      %v689 = vsel %vm684, %v664, 0.0
      %v690 = vsel %vm684, %v669, 0.0
      %v691 = vsel %vm684, %v674, 0.0
      %v692 = vsel %vm684, %v679, 0.0
      %v693 = vadd.f32 %v536, %v685
      %v694 = vadd.f32 %v537, %v686
      %v695 = vadd.f32 %v538, %v687
      %v696 = vadd.f32 %v539, %v688
      %v697 = vadd.f32 %v540, %v689
      %v698 = vadd.f32 %v541, %v690
      %v699 = vadd.f32 %v542, %v691
      %v700 = vadd.f32 %v543, %v692
      %s701 = scalar_lea.vmem %s1, 128
      %v702 = vld [vmem:[%s701] sm:$0xff]
      %v703 = vld [vmem:[%s701 + $0x8] sm:$0xff]
      %v704 = vld [vmem:[%s701 + $0x10] sm:$0xff]
      %v705 = vld [vmem:[%s701 + $0x18] sm:$0xff]
      %v706 = vld [vmem:[%s701 + $0x20] sm:$0xff]
      %v707 = vld [vmem:[%s701 + $0x28] sm:$0xff]
      %v708 = vld [vmem:[%s701 + $0x30] sm:$0xff]
      %v709 = vld [vmem:[%s701 + $0x38] sm:$0xff]
      %v711 = vsel %vm395, %v702, 0
      %v714 = vsel %vm395, %v703, 0
      %v717 = vsel %vm395, %v704, 0
      %v720 = vsel %vm395, %v705, 0
      %v723 = vsel %vm395, %v706, 0
      %v726 = vsel %vm395, %v707, 0
      %v729 = vsel %vm395, %v708, 0
      %v732 = vsel %vm395, %v709, 0
      %734 = vmatprep.subr.mxu0 0.0
      %735 = vmatpush1.msra.mxu0 %v359
      %736 = vmatprep.subr.mxu0 0.0
      %737 = vmatpush1.msra.mxu0 %v364
      %738 = vmatprep.subr.mxu0 0.0
      %739 = vmatpush1.msra.mxu0 %v369
      %740 = vmatprep.subr.mxu0 0.0
      %741 = vmatpush1.msra.mxu0 %v374
      %742 = vmatprep.subr.mxu0 0.0
      %743 = vmatpush1.msra.mxu0 0.0
      %744 = vmatprep.subr.mxu0 0.0
      %745 = vmatpush1.msra.mxu0 0.0
      %746 = vmatprep.subr.mxu0 0.0
      %747 = vmatpush1.msra.mxu0 0.0
      %748 = vmatprep.subr.mxu0 0.0
      %749 = vmatpush1.msra.mxu0 0.0
      %750 = vmatprep.subr.mxu0 0.0
      %751 = vmatpush1.msra.mxu0 0.0
      %752 = vmatprep.subr.mxu0 0.0
      %753 = vmatpush1.msra.mxu0 0.0
      %754 = vmatprep.subr.mxu0 0.0
      %755 = vmatpush1.msra.mxu0 0.0
      %756 = vmatprep.subr.mxu0 0.0
      %757 = vmatpush1.msra.mxu0 0.0
      %758 = vmatprep.subr.mxu0 0.0
      %759 = vmatpush1.msra.mxu0 0.0
      %760 = vmatprep.subr.mxu0 0.0
      %761 = vmatpush1.msra.mxu0 0.0
      %762 = vmatprep.subr.mxu0 0.0
      %763 = vmatpush1.msra.mxu0 0.0
      %764 = vmatprep.subr.mxu0 0.0
      %765 = vmatpush1.msra.mxu0 0.0
      %766 = vmatprep.subr.mxu0 0.0
      %767 = vmatpush1.msra.mxu0 0.0
      %768 = vmatprep.subr.mxu0 0.0
      %769 = vmatpush1.msra.mxu0 0.0
      %770 = vmatprep.subr.mxu0 0.0
      %771 = vmatpush1.msra.mxu0 0.0
      %772 = vmatprep.subr.mxu0 0.0
      %773 = vmatpush1.msra.mxu0 0.0
      %774 = vmatprep.subr.mxu0 0.0
      %775 = vmatpush1.msra.mxu0 0.0
      %776 = vmatprep.subr.mxu0 0.0
      %777 = vmatpush1.msra.mxu0 0.0
      %778 = vmatprep.subr.mxu0 0.0
      %779 = vmatpush1.msra.mxu0 0.0
      %780 = vmatprep.subr.mxu0 0.0
      %781 = vmatpush1.msra.mxu0 0.0
      %782 = vmatprep.subr.mxu0 0.0
      %783 = vmatpush1.msra.mxu0 0.0
      %784 = vmatprep.subr.mxu0 0.0
      %785 = vmatpush1.msra.mxu0 0.0
      %786 = vmatprep.subr.mxu0 0.0
      %787 = vmatpush1.msra.mxu0 0.0
      %788 = vmatprep.subr.mxu0 0.0
      %789 = vmatpush1.msra.mxu0 0.0
      %790 = vmatprep.subr.mxu0 0.0
      %791 = vmatpush1.msra.mxu0 0.0
      %792 = vmatprep.subr.mxu0 0.0
      %793 = vmatpush1.msra.mxu0 0.0
      %794 = vmatprep.subr.mxu0 0.0
      %795 = vmatpush1.msra.mxu0 0.0
      %796 = vmatprep.subr.mxu0 0.0
      %797 = vmatpush1.msra.mxu0 0.0
      %798 = vmatprep.mubr.f32.mxu0 0.0
      %799 = vmatmul.mubr.f32.gmra.mrb[0].mxu0 %v711
      %v800 = vpop.f32.mrb[0].mxu0
      %v801 = vadd.f32 0.0, %v800
      %v802 = vpop.f32.mrb[0].mxu0
      %803 = vmatprep.mubr.f32.mxu0 0.0
      %804 = vmatmul.mubr.f32.gmra.mrb[0].mxu0 %v714
      %v805 = vpop.f32.mrb[0].mxu0
      %v806 = vadd.f32 0.0, %v805
      %v807 = vpop.f32.mrb[0].mxu0
      %808 = vmatprep.mubr.f32.mxu0 0.0
      %809 = vmatmul.mubr.f32.gmra.mrb[0].mxu0 %v717
      %v810 = vpop.f32.mrb[0].mxu0
      %v811 = vadd.f32 0.0, %v810
      %v812 = vpop.f32.mrb[0].mxu0
      %813 = vmatprep.mubr.f32.mxu0 0.0
      %814 = vmatmul.mubr.f32.gmra.mrb[0].mxu0 %v720
      %v815 = vpop.f32.mrb[0].mxu0
      %v816 = vadd.f32 0.0, %v815
      %v817 = vpop.f32.mrb[0].mxu0
      %818 = vmatprep.mubr.f32.mxu0 0.0
      %819 = vmatmul.mubr.f32.gmra.mrb[0].mxu0 %v723
      %v820 = vpop.f32.mrb[0].mxu0
      %v821 = vadd.f32 0.0, %v820
      %v822 = vpop.f32.mrb[0].mxu0
      %823 = vmatprep.mubr.f32.mxu0 0.0
      %824 = vmatmul.mubr.f32.gmra.mrb[0].mxu0 %v726
      %v825 = vpop.f32.mrb[0].mxu0
      %v826 = vadd.f32 0.0, %v825
      %v827 = vpop.f32.mrb[0].mxu0
      %828 = vmatprep.mubr.f32.mxu0 0.0
      %829 = vmatmul.mubr.f32.gmra.mrb[0].mxu0 %v729
      %v830 = vpop.f32.mrb[0].mxu0
      %v831 = vadd.f32 0.0, %v830
      %v832 = vpop.f32.mrb[0].mxu0
      %833 = vmatprep.mubr.f32.mxu0 0.0
      %834 = vmatmul.mubr.f32.gmra.mrb[0].mxu0 %v732
      %v835 = vpop.f32.mrb[0].mxu0
      %v836 = vadd.f32 0.0, %v835
      %v837 = vpop.f32.mrb[0].mxu0
      %838 = vdwg.mxu0
      %vm839 = vcmp.ge.s32.totalorder %v378, 5
      %vm840 = vcmp.lt.s32.totalorder %v378, 14
      %vm841 = vmand %vm839, %vm840
      %v842 = vsel %vm841, %v801, 0.0
      %v843 = vsel %vm841, %v806, 0.0
      %v844 = vsel %vm841, %v811, 0.0
      %v845 = vsel %vm841, %v816, 0.0
      %v846 = vsel %vm841, %v821, 0.0
      %v847 = vsel %vm841, %v826, 0.0
      %v848 = vsel %vm841, %v831, 0.0
      %v849 = vsel %vm841, %v836, 0.0
      %v850 = vadd.f32 %v693, %v842
      %v851 = vadd.f32 %v694, %v843
      %v852 = vadd.f32 %v695, %v844
      %v853 = vadd.f32 %v696, %v845
      %v854 = vadd.f32 %v697, %v846
      %v855 = vadd.f32 %v698, %v847
      %v856 = vadd.f32 %v699, %v848
      %v857 = vadd.f32 %v700, %v849
      %s858 = scalar_lea.vmem %s1, 192
      %v859 = vld [vmem:[%s858] sm:$0xff]
      %v860 = vld [vmem:[%s858 + $0x8] sm:$0xff]
      %v861 = vld [vmem:[%s858 + $0x10] sm:$0xff]
      %v862 = vld [vmem:[%s858 + $0x18] sm:$0xff]
      %v863 = vld [vmem:[%s858 + $0x20] sm:$0xff]
      %v864 = vld [vmem:[%s858 + $0x28] sm:$0xff]
      %v865 = vld [vmem:[%s858 + $0x30] sm:$0xff]
      %v866 = vld [vmem:[%s858 + $0x38] sm:$0xff]
      %v868 = vsel %vm395, %v859, 0
      %v871 = vsel %vm395, %v860, 0
      %v874 = vsel %vm395, %v861, 0
      %v877 = vsel %vm395, %v862, 0
      %v880 = vsel %vm395, %v863, 0
      %v883 = vsel %vm395, %v864, 0
      %v886 = vsel %vm395, %v865, 0
      %v889 = vsel %vm395, %v866, 0
      %891 = vmatprep.subr.mxu0 0.0
      %892 = vmatpush1.msra.mxu0 %v359
      %893 = vmatprep.subr.mxu0 0.0
      %894 = vmatpush1.msra.mxu0 %v364
      %895 = vmatprep.subr.mxu0 0.0
      %896 = vmatpush1.msra.mxu0 %v369
      %897 = vmatprep.subr.mxu0 0.0
      %898 = vmatpush1.msra.mxu0 %v374
      %899 = vmatprep.subr.mxu0 0.0
      %900 = vmatpush1.msra.mxu0 0.0
      %901 = vmatprep.subr.mxu0 0.0
      %902 = vmatpush1.msra.mxu0 0.0
      %903 = vmatprep.subr.mxu0 0.0
      %904 = vmatpush1.msra.mxu0 0.0
      %905 = vmatprep.subr.mxu0 0.0
      %906 = vmatpush1.msra.mxu0 0.0
      %907 = vmatprep.subr.mxu0 0.0
      %908 = vmatpush1.msra.mxu0 0.0
      %909 = vmatprep.subr.mxu0 0.0
      %910 = vmatpush1.msra.mxu0 0.0
      %911 = vmatprep.subr.mxu0 0.0
      %912 = vmatpush1.msra.mxu0 0.0
      %913 = vmatprep.subr.mxu0 0.0
      %914 = vmatpush1.msra.mxu0 0.0
      %915 = vmatprep.subr.mxu0 0.0
      %916 = vmatpush1.msra.mxu0 0.0
      %917 = vmatprep.subr.mxu0 0.0
      %918 = vmatpush1.msra.mxu0 0.0
      %919 = vmatprep.subr.mxu0 0.0
      %920 = vmatpush1.msra.mxu0 0.0
      %921 = vmatprep.subr.mxu0 0.0
      %922 = vmatpush1.msra.mxu0 0.0
      %923 = vmatprep.subr.mxu0 0.0
      %924 = vmatpush1.msra.mxu0 0.0
      %925 = vmatprep.subr.mxu0 0.0
      %926 = vmatpush1.msra.mxu0 0.0
      %927 = vmatprep.subr.mxu0 0.0
      %928 = vmatpush1.msra.mxu0 0.0
      %929 = vmatprep.subr.mxu0 0.0
      %930 = vmatpush1.msra.mxu0 0.0
      %931 = vmatprep.subr.mxu0 0.0
      %932 = vmatpush1.msra.mxu0 0.0
      %933 = vmatprep.subr.mxu0 0.0
      %934 = vmatpush1.msra.mxu0 0.0
      %935 = vmatprep.subr.mxu0 0.0
      %936 = vmatpush1.msra.mxu0 0.0
      %937 = vmatprep.subr.mxu0 0.0
      %938 = vmatpush1.msra.mxu0 0.0
      %939 = vmatprep.subr.mxu0 0.0
      %940 = vmatpush1.msra.mxu0 0.0
      %941 = vmatprep.subr.mxu0 0.0
      %942 = vmatpush1.msra.mxu0 0.0
      %943 = vmatprep.subr.mxu0 0.0
      %944 = vmatpush1.msra.mxu0 0.0
      %945 = vmatprep.subr.mxu0 0.0
      %946 = vmatpush1.msra.mxu0 0.0
      %947 = vmatprep.subr.mxu0 0.0
      %948 = vmatpush1.msra.mxu0 0.0
      %949 = vmatprep.subr.mxu0 0.0
      %950 = vmatpush1.msra.mxu0 0.0
      %951 = vmatprep.subr.mxu0 0.0
      %952 = vmatpush1.msra.mxu0 0.0
      %953 = vmatprep.subr.mxu0 0.0
      %954 = vmatpush1.msra.mxu0 0.0
      %955 = vmatprep.mubr.f32.mxu0 0.0
      %956 = vmatmul.mubr.f32.gmra.mrb[0].mxu0 %v868
      %v957 = vpop.f32.mrb[0].mxu0
      %v958 = vadd.f32 0.0, %v957
      %v959 = vpop.f32.mrb[0].mxu0
      %960 = vmatprep.mubr.f32.mxu0 0.0
      %961 = vmatmul.mubr.f32.gmra.mrb[0].mxu0 %v871
      %v962 = vpop.f32.mrb[0].mxu0
      %v963 = vadd.f32 0.0, %v962
      %v964 = vpop.f32.mrb[0].mxu0
      %965 = vmatprep.mubr.f32.mxu0 0.0
      %966 = vmatmul.mubr.f32.gmra.mrb[0].mxu0 %v874
      %v967 = vpop.f32.mrb[0].mxu0
      %v968 = vadd.f32 0.0, %v967
      %v969 = vpop.f32.mrb[0].mxu0
      %970 = vmatprep.mubr.f32.mxu0 0.0
      %971 = vmatmul.mubr.f32.gmra.mrb[0].mxu0 %v877
      %v972 = vpop.f32.mrb[0].mxu0
      %v973 = vadd.f32 0.0, %v972
      %v974 = vpop.f32.mrb[0].mxu0
      %975 = vmatprep.mubr.f32.mxu0 0.0
      %976 = vmatmul.mubr.f32.gmra.mrb[0].mxu0 %v880
      %v977 = vpop.f32.mrb[0].mxu0
      %v978 = vadd.f32 0.0, %v977
      %v979 = vpop.f32.mrb[0].mxu0
      %980 = vmatprep.mubr.f32.mxu0 0.0
      %981 = vmatmul.mubr.f32.gmra.mrb[0].mxu0 %v883
      %v982 = vpop.f32.mrb[0].mxu0
      %v983 = vadd.f32 0.0, %v982
      %v984 = vpop.f32.mrb[0].mxu0
      %985 = vmatprep.mubr.f32.mxu0 0.0
      %986 = vmatmul.mubr.f32.gmra.mrb[0].mxu0 %v886
      %v987 = vpop.f32.mrb[0].mxu0
      %v988 = vadd.f32 0.0, %v987
      %v989 = vpop.f32.mrb[0].mxu0
      %990 = vmatprep.mubr.f32.mxu0 0.0
      %991 = vmatmul.mubr.f32.gmra.mrb[0].mxu0 %v889
      %v992 = vpop.f32.mrb[0].mxu0
      %v993 = vadd.f32 0.0, %v992
      %v994 = vpop.f32.mrb[0].mxu0
      %995 = vdwg.mxu0
      %vm996 = vcmp.ge.s32.totalorder %v378, 14
      %vm997 = vcmp.lt.s32.totalorder %v378, 50
      %vm998 = vmand %vm996, %vm997
      %v999 = vsel %vm998, %v958, 0.0
      %v1000 = vsel %vm998, %v963, 0.0
      %v1001 = vsel %vm998, %v968, 0.0
      %v1002 = vsel %vm998, %v973, 0.0
      %v1003 = vsel %vm998, %v978, 0.0
      %v1004 = vsel %vm998, %v983, 0.0
      %v1005 = vsel %vm998, %v988, 0.0
      %v1006 = vsel %vm998, %v993, 0.0
      %v1007 = vadd.f32 %v850, %v999
      %v1008 = vadd.f32 %v851, %v1000
      %v1009 = vadd.f32 %v852, %v1001
      %v1010 = vadd.f32 %v853, %v1002
      %v1011 = vadd.f32 %v854, %v1003
      %v1012 = vadd.f32 %v855, %v1004
      %v1013 = vadd.f32 %v856, %v1005
      %v1014 = vadd.f32 %v857, %v1006
      %v1015 = vld [vmem:[%s2] sm:$0xff]
      %v1016 = vld [vmem:[%s2 + $0x8] sm:$0xff]
      %v1017 = vld [vmem:[%s2 + $0x10] sm:$0xff]
      %v1018 = vld [vmem:[%s2 + $0x18] sm:$0xff]
      %v1019 = vld [vmem:[%s2 + $0x20] sm:$0xff]
      %v1020 = vld [vmem:[%s2 + $0x28] sm:$0xff]
      %v1021 = vld [vmem:[%s2 + $0x30] sm:$0xff]
      %v1022 = vld [vmem:[%s2 + $0x38] sm:$0xff]
      %v1023 = vld [vmem:[%s4] sm:$0xff]
      %v1024 = vld [vmem:[%s4 + $0x8] sm:$0xff]
      %v1025 = vld [vmem:[%s4 + $0x10] sm:$0xff]
      %v1026 = vld [vmem:[%s4 + $0x18] sm:$0xff]
      %v1027 = vld [vmem:[%s4 + $0x20] sm:$0xff]
      %v1028 = vld [vmem:[%s4 + $0x28] sm:$0xff]
      %v1029 = vld [vmem:[%s4 + $0x30] sm:$0xff]
      %v1030 = vld [vmem:[%s4 + $0x38] sm:$0xff]
      %v1031 = vld [vmem:[%s4 + $0x40] sm:$0xff]
      %v1032 = vld [vmem:[%s4 + $0x48] sm:$0xff]
      %v1033 = vld [vmem:[%s4 + $0x50] sm:$0xff]
      %v1034 = vld [vmem:[%s4 + $0x58] sm:$0xff]
      %v1035 = vld [vmem:[%s4 + $0x60] sm:$0xff]
      %v1036 = vld [vmem:[%s4 + $0x68] sm:$0xff]
      %v1037 = vld [vmem:[%s4 + $0x70] sm:$0xff]
      %v1038 = vld [vmem:[%s4 + $0x78] sm:$0xff]
      %v1039 = vld [vmem:[%s4 + $0x80] sm:$0xff]
      %v1040 = vld [vmem:[%s4 + $0x88] sm:$0xff]
      %v1041 = vld [vmem:[%s4 + $0x90] sm:$0xff]
      %v1042 = vld [vmem:[%s4 + $0x98] sm:$0xff]
      %v1043 = vld [vmem:[%s4 + $0xa0] sm:$0xff]
      %v1044 = vld [vmem:[%s4 + $0xa8] sm:$0xff]
      %v1045 = vld [vmem:[%s4 + $0xb0] sm:$0xff]
      %v1046 = vld [vmem:[%s4 + $0xb8] sm:$0xff]
      %v1047 = vld [vmem:[%s4 + $0xc0] sm:$0xff]
      %v1048 = vld [vmem:[%s4 + $0xc8] sm:$0xff]
      %v1049 = vld [vmem:[%s4 + $0xd0] sm:$0xff]
      %v1050 = vld [vmem:[%s4 + $0xd8] sm:$0xff]
      %v1051 = vld [vmem:[%s4 + $0xe0] sm:$0xff]
      %v1052 = vld [vmem:[%s4 + $0xe8] sm:$0xff]
      %v1053 = vld [vmem:[%s4 + $0xf0] sm:$0xff]
      %v1054 = vld [vmem:[%s4 + $0xf8] sm:$0xff]
      %1055 = vmatprep.subr.mxu0 %v1024
      %1056 = vmatpush1.msra.mxu0 %v1023
      %1057 = vmatprep.subr.mxu0 %v1026
      %1058 = vmatpush1.msra.mxu0 %v1025
      %1059 = vmatprep.subr.mxu0 %v1028
      %1060 = vmatpush1.msra.mxu0 %v1027
      %1061 = vmatprep.subr.mxu0 %v1030
      %1062 = vmatpush1.msra.mxu0 %v1029
      %1063 = vmatprep.subr.mxu0 %v1032
      %1064 = vmatpush1.msra.mxu0 %v1031
      %1065 = vmatprep.subr.mxu0 %v1034
      %1066 = vmatpush1.msra.mxu0 %v1033
      %1067 = vmatprep.subr.mxu0 %v1036
      %1068 = vmatpush1.msra.mxu0 %v1035
      %1069 = vmatprep.subr.mxu0 %v1038
      %1070 = vmatpush1.msra.mxu0 %v1037
      %1071 = vmatprep.subr.mxu0 %v1040
      %1072 = vmatpush1.msra.mxu0 %v1039
      %1073 = vmatprep.subr.mxu0 %v1042
      %1074 = vmatpush1.msra.mxu0 %v1041
      %1075 = vmatprep.subr.mxu0 %v1044
      %1076 = vmatpush1.msra.mxu0 %v1043
      %1077 = vmatprep.subr.mxu0 %v1046
      %1078 = vmatpush1.msra.mxu0 %v1045
      %1079 = vmatprep.subr.mxu0 %v1048
      %1080 = vmatpush1.msra.mxu0 %v1047
      %1081 = vmatprep.subr.mxu0 %v1050
      %1082 = vmatpush1.msra.mxu0 %v1049
      %1083 = vmatprep.subr.mxu0 %v1052
      %1084 = vmatpush1.msra.mxu0 %v1051
      %1085 = vmatprep.subr.mxu0 %v1054
      %1086 = vmatpush1.msra.mxu0 %v1053
      %1087 = vmatprep.subr.mxu0 0.0
      %1088 = vmatpush1.msra.mxu0 0.0
      %1089 = vmatprep.subr.mxu0 0.0
      %1090 = vmatpush1.msra.mxu0 0.0
      %1091 = vmatprep.subr.mxu0 0.0
      %1092 = vmatpush1.msra.mxu0 0.0
      %1093 = vmatprep.subr.mxu0 0.0
      %1094 = vmatpush1.msra.mxu0 0.0
      %1095 = vmatprep.subr.mxu0 0.0
      %1096 = vmatpush1.msra.mxu0 0.0
      %1097 = vmatprep.subr.mxu0 0.0
      %1098 = vmatpush1.msra.mxu0 0.0
      %1099 = vmatprep.subr.mxu0 0.0
      %1100 = vmatpush1.msra.mxu0 0.0
      %1101 = vmatprep.subr.mxu0 0.0
      %1102 = vmatpush1.msra.mxu0 0.0
      %1103 = vmatprep.subr.mxu0 0.0
      %1104 = vmatpush1.msra.mxu0 0.0
      %1105 = vmatprep.subr.mxu0 0.0
      %1106 = vmatpush1.msra.mxu0 0.0
      %1107 = vmatprep.subr.mxu0 0.0
      %1108 = vmatpush1.msra.mxu0 0.0
      %1109 = vmatprep.subr.mxu0 0.0
      %1110 = vmatpush1.msra.mxu0 0.0
      %1111 = vmatprep.subr.mxu0 0.0
      %1112 = vmatpush1.msra.mxu0 0.0
      %1113 = vmatprep.subr.mxu0 0.0
      %1114 = vmatpush1.msra.mxu0 0.0
      %1115 = vmatprep.subr.mxu0 0.0
      %1116 = vmatpush1.msra.mxu0 0.0
      %1117 = vmatprep.subr.mxu0 0.0
      %1118 = vmatpush1.msra.mxu0 0.0
      %1119 = vmatprep.mubr.f32.mxu0 0.0
      %1120 = vmatmul.mubr.f32.gmra.mrb[0].mxu0 %v1007
      %v1121 = vpop.f32.mrb[0].mxu0
      %v1122 = vadd.f32 0.0, %v1121
      %v1123 = vpop.f32.mrb[0].mxu0
      %v1124 = vadd.f32 0.0, %v1123
      %1125 = vmatprep.mubr.f32.mxu0 0.0
      %1126 = vmatmul.mubr.f32.gmra.mrb[0].mxu0 %v1008
      %v1127 = vpop.f32.mrb[0].mxu0
      %v1128 = vadd.f32 0.0, %v1127
      %v1129 = vpop.f32.mrb[0].mxu0
      %v1130 = vadd.f32 0.0, %v1129
      %1131 = vmatprep.mubr.f32.mxu0 0.0
      %1132 = vmatmul.mubr.f32.gmra.mrb[0].mxu0 %v1009
      %v1133 = vpop.f32.mrb[0].mxu0
      %v1134 = vadd.f32 0.0, %v1133
      %v1135 = vpop.f32.mrb[0].mxu0
      %v1136 = vadd.f32 0.0, %v1135
      %1137 = vmatprep.mubr.f32.mxu0 0.0
      %1138 = vmatmul.mubr.f32.gmra.mrb[0].mxu0 %v1010
      %v1139 = vpop.f32.mrb[0].mxu0
      %v1140 = vadd.f32 0.0, %v1139
      %v1141 = vpop.f32.mrb[0].mxu0
      %v1142 = vadd.f32 0.0, %v1141
      %1143 = vmatprep.mubr.f32.mxu0 0.0
      %1144 = vmatmul.mubr.f32.gmra.mrb[0].mxu0 %v1011
      %v1145 = vpop.f32.mrb[0].mxu0
      %v1146 = vadd.f32 0.0, %v1145
      %v1147 = vpop.f32.mrb[0].mxu0
      %v1148 = vadd.f32 0.0, %v1147
      %1149 = vmatprep.mubr.f32.mxu0 0.0
      %1150 = vmatmul.mubr.f32.gmra.mrb[0].mxu0 %v1012
      %v1151 = vpop.f32.mrb[0].mxu0
      %v1152 = vadd.f32 0.0, %v1151
      %v1153 = vpop.f32.mrb[0].mxu0
      %v1154 = vadd.f32 0.0, %v1153
      %1155 = vmatprep.mubr.f32.mxu0 0.0
      %1156 = vmatmul.mubr.f32.gmra.mrb[0].mxu0 %v1013
      %v1157 = vpop.f32.mrb[0].mxu0
      %v1158 = vadd.f32 0.0, %v1157
      %v1159 = vpop.f32.mrb[0].mxu0
      %v1160 = vadd.f32 0.0, %v1159
      %1161 = vmatprep.mubr.f32.mxu0 0.0
      %1162 = vmatmul.mubr.f32.gmra.mrb[0].mxu0 %v1014
      %v1163 = vpop.f32.mrb[0].mxu0
      %v1164 = vadd.f32 0.0, %v1163
      %v1165 = vpop.f32.mrb[0].mxu0
      %v1166 = vadd.f32 0.0, %v1165
      %1167 = vdwg.mxu0
      %v1169 = vsel %vm395, %v1015, 0
      %v1172 = vsel %vm395, %v1016, 0
      %v1175 = vsel %vm395, %v1017, 0
      %v1178 = vsel %vm395, %v1018, 0
      %v1181 = vsel %vm395, %v1019, 0
      %v1184 = vsel %vm395, %v1020, 0
      %v1187 = vsel %vm395, %v1021, 0
      %v1190 = vsel %vm395, %v1022, 0
      %1192 = vmatprep.subr.mxu0 %v253
      %1193 = vmatpush1.msra.mxu0 %v252
      %1194 = vmatprep.subr.mxu0 %v255
      %1195 = vmatpush1.msra.mxu0 %v254
      %1196 = vmatprep.subr.mxu0 %v257
      %1197 = vmatpush1.msra.mxu0 %v256
      %1198 = vmatprep.subr.mxu0 %v259
      %1199 = vmatpush1.msra.mxu0 %v258
      %1200 = vmatprep.subr.mxu0 0.0
      %1201 = vmatpush1.msra.mxu0 0.0
      %1202 = vmatprep.subr.mxu0 0.0
      %1203 = vmatpush1.msra.mxu0 0.0
      %1204 = vmatprep.subr.mxu0 0.0
      %1205 = vmatpush1.msra.mxu0 0.0
      %1206 = vmatprep.subr.mxu0 0.0
      %1207 = vmatpush1.msra.mxu0 0.0
      %1208 = vmatprep.subr.mxu0 0.0
      %1209 = vmatpush1.msra.mxu0 0.0
      %1210 = vmatprep.subr.mxu0 0.0
      %1211 = vmatpush1.msra.mxu0 0.0
      %1212 = vmatprep.subr.mxu0 0.0
      %1213 = vmatpush1.msra.mxu0 0.0
      %1214 = vmatprep.subr.mxu0 0.0
      %1215 = vmatpush1.msra.mxu0 0.0
      %1216 = vmatprep.subr.mxu0 0.0
      %1217 = vmatpush1.msra.mxu0 0.0
      %1218 = vmatprep.subr.mxu0 0.0
      %1219 = vmatpush1.msra.mxu0 0.0
      %1220 = vmatprep.subr.mxu0 0.0
      %1221 = vmatpush1.msra.mxu0 0.0
      %1222 = vmatprep.subr.mxu0 0.0
      %1223 = vmatpush1.msra.mxu0 0.0
      %1224 = vmatprep.subr.mxu0 0.0
      %1225 = vmatpush1.msra.mxu0 0.0
      %1226 = vmatprep.subr.mxu0 0.0
      %1227 = vmatpush1.msra.mxu0 0.0
      %1228 = vmatprep.subr.mxu0 0.0
      %1229 = vmatpush1.msra.mxu0 0.0
      %1230 = vmatprep.subr.mxu0 0.0
      %1231 = vmatpush1.msra.mxu0 0.0
      %1232 = vmatprep.subr.mxu0 0.0
      %1233 = vmatpush1.msra.mxu0 0.0
      %1234 = vmatprep.subr.mxu0 0.0
      %1235 = vmatpush1.msra.mxu0 0.0
      %1236 = vmatprep.subr.mxu0 0.0
      %1237 = vmatpush1.msra.mxu0 0.0
      %1238 = vmatprep.subr.mxu0 0.0
      %1239 = vmatpush1.msra.mxu0 0.0
      %1240 = vmatprep.subr.mxu0 0.0
      %1241 = vmatpush1.msra.mxu0 0.0
      %1242 = vmatprep.subr.mxu0 0.0
      %1243 = vmatpush1.msra.mxu0 0.0
      %1244 = vmatprep.subr.mxu0 0.0
      %1245 = vmatpush1.msra.mxu0 0.0
      %1246 = vmatprep.subr.mxu0 0.0
      %1247 = vmatpush1.msra.mxu0 0.0
      %1248 = vmatprep.subr.mxu0 0.0
      %1249 = vmatpush1.msra.mxu0 0.0
      %1250 = vmatprep.subr.mxu0 0.0
      %1251 = vmatpush1.msra.mxu0 0.0
      %1252 = vmatprep.subr.mxu0 0.0
      %1253 = vmatpush1.msra.mxu0 0.0
      %1254 = vmatprep.subr.mxu0 0.0
      %1255 = vmatpush1.msra.mxu0 0.0
      %1256 = vmatprep.mubr.f32.mxu0 0.0
      %1257 = vmatmul.mubr.f32.gmra.mrb[0].mxu0 %v1169
      %v1258 = vpop.f32.mrb[0].mxu0
      %v1259 = vadd.f32 %v1122, %v1258
      %v1260 = vpop.f32.mrb[0].mxu0
      %v1261 = vadd.f32 %v1124, %v1260
      %1262 = vmatprep.mubr.f32.mxu0 0.0
      %1263 = vmatmul.mubr.f32.gmra.mrb[0].mxu0 %v1172
      %v1264 = vpop.f32.mrb[0].mxu0
      %v1265 = vadd.f32 %v1128, %v1264
      %v1266 = vpop.f32.mrb[0].mxu0
      %v1267 = vadd.f32 %v1130, %v1266
      %1268 = vmatprep.mubr.f32.mxu0 0.0
      %1269 = vmatmul.mubr.f32.gmra.mrb[0].mxu0 %v1175
      %v1270 = vpop.f32.mrb[0].mxu0
      %v1271 = vadd.f32 %v1134, %v1270
      %v1272 = vpop.f32.mrb[0].mxu0
      %v1273 = vadd.f32 %v1136, %v1272
      %1274 = vmatprep.mubr.f32.mxu0 0.0
      %1275 = vmatmul.mubr.f32.gmra.mrb[0].mxu0 %v1178
      %v1276 = vpop.f32.mrb[0].mxu0
      %v1277 = vadd.f32 %v1140, %v1276
      %v1278 = vpop.f32.mrb[0].mxu0
      %v1279 = vadd.f32 %v1142, %v1278
      %1280 = vmatprep.mubr.f32.mxu0 0.0
      %1281 = vmatmul.mubr.f32.gmra.mrb[0].mxu0 %v1181
      %v1282 = vpop.f32.mrb[0].mxu0
      %v1283 = vadd.f32 %v1146, %v1282
      %v1284 = vpop.f32.mrb[0].mxu0
      %v1285 = vadd.f32 %v1148, %v1284
      %1286 = vmatprep.mubr.f32.mxu0 0.0
      %1287 = vmatmul.mubr.f32.gmra.mrb[0].mxu0 %v1184
      %v1288 = vpop.f32.mrb[0].mxu0
      %v1289 = vadd.f32 %v1152, %v1288
      %v1290 = vpop.f32.mrb[0].mxu0
      %v1291 = vadd.f32 %v1154, %v1290
      %1292 = vmatprep.mubr.f32.mxu0 0.0
      %1293 = vmatmul.mubr.f32.gmra.mrb[0].mxu0 %v1187
      %v1294 = vpop.f32.mrb[0].mxu0
      %v1295 = vadd.f32 %v1158, %v1294
      %v1296 = vpop.f32.mrb[0].mxu0
      %v1297 = vadd.f32 %v1160, %v1296
      %1298 = vmatprep.mubr.f32.mxu0 0.0
      %1299 = vmatmul.mubr.f32.gmra.mrb[0].mxu0 %v1190
      %v1300 = vpop.f32.mrb[0].mxu0
      %v1301 = vadd.f32 %v1164, %v1300
      %v1302 = vpop.f32.mrb[0].mxu0
      %v1303 = vadd.f32 %v1166, %v1302
      %1304 = vdwg.mxu0
      %v1305 = vmax.f32 %v1259, 0.0
      %v1306 = vmax.f32 %v1261, 0.0
      %v1307 = vmax.f32 %v1265, 0.0
      %v1308 = vmax.f32 %v1267, 0.0
      %v1309 = vmax.f32 %v1271, 0.0
      %v1310 = vmax.f32 %v1273, 0.0
      %v1311 = vmax.f32 %v1277, 0.0
      %v1312 = vmax.f32 %v1279, 0.0
      %v1313 = vmax.f32 %v1283, 0.0
      %v1314 = vmax.f32 %v1285, 0.0
      %v1315 = vmax.f32 %v1289, 0.0
      %v1316 = vmax.f32 %v1291, 0.0
      %v1317 = vmax.f32 %v1295, 0.0
      %v1318 = vmax.f32 %v1297, 0.0
      %v1319 = vmax.f32 %v1301, 0.0
      %v1320 = vmax.f32 %v1303, 0.0
      %1321 = vst [vmem:[%s251] sm:$0xff] %v1305
      %1322 = vst [vmem:[%s251 + $0x8] sm:$0xff] %v1306
      %1323 = vst [vmem:[%s251 + $0x10] sm:$0xff] %v1307
      %1324 = vst [vmem:[%s251 + $0x18] sm:$0xff] %v1308
      %1325 = vst [vmem:[%s251 + $0x20] sm:$0xff] %v1309
      %1326 = vst [vmem:[%s251 + $0x28] sm:$0xff] %v1310
      %1327 = vst [vmem:[%s251 + $0x30] sm:$0xff] %v1311
      %1328 = vst [vmem:[%s251 + $0x38] sm:$0xff] %v1312
      %1329 = vst [vmem:[%s251 + $0x40] sm:$0xff] %v1313
      %1330 = vst [vmem:[%s251 + $0x48] sm:$0xff] %v1314
      %1331 = vst [vmem:[%s251 + $0x50] sm:$0xff] %v1315
      %1332 = vst [vmem:[%s251 + $0x58] sm:$0xff] %v1316
      %1333 = vst [vmem:[%s251 + $0x60] sm:$0xff] %v1317
      %1334 = vst [vmem:[%s251 + $0x68] sm:$0xff] %v1318
      %1335 = vst [vmem:[%s251 + $0x70] sm:$0xff] %v1319
      %1336 = vst [vmem:[%s251 + $0x78] sm:$0xff] %v1320
      %p1337 = scmp.lt.s32.totalorder %s17, 1
      %s1338 = scalar_select %p1337, %s17, 1
      %s1339 = smul.addr %s1338, 16
      %s1340 = smul.addr %s1339, 8
      %s1341 = scalar_lea.vmem %s6, %s1340
      // Predicated region
      $region45: #{psp5_forward.1} parent=43 // pred_check
        %p1342 = pneg %p166
      $region46: #{psp5_forward.1} parent=43 // pred_check_branch
        %1344 = sbr.rel (%p1342) target = $region48
      $region47: #{psp5_forward.1} parent=43 // pred_region
        _
      $region48: #{psp5_forward.1} parent=43 // pred_fallthru
        _
    $region44: #{psp5_forward.1} parent=5 // pred_fallthru
      _
    %p1345 = scmp.le.s32.totalorder 2, %s12
    // Predicated region
    $region49: #{psp5_forward.1} parent=5 // pred_check
      %p1346 = pneg %p1345
    $region50: #{psp5_forward.1} parent=5 // pred_check_branch
      %1348 = sbr.rel (%p1346) target = $region52
    $region51: #{psp5_forward.1} parent=5 // pred_region
      %s1349 = ssub.s32 %s12, 2
      // Predicated region
      $region53: #{psp5_forward.1} parent=51 // pred_check
        %p1350 = pneg %p172
      $region54: #{psp5_forward.1} parent=51 // pred_check_branch
        %1352 = sbr.rel (%p1350) target = $region56
      $region55: #{psp5_forward.1} parent=51 // pred_region
        %p1353 = scmp.lt.s32.totalorder %s18, 1
        %s1354 = scalar_select %p1353, %s18, 1
        %s1355 = smul.addr %s1354, 16
        %s1356 = smul.addr %s1355, 8
        %s1357 = scalar_lea.vmem %s6, %s1356
      $region56: #{psp5_forward.1} parent=51 // pred_fallthru
        _
    $region52: #{psp5_forward.1} parent=5 // pred_fallthru
      _
  $region6: #{psp5_forward.1} parent=0 // loop_footer
    %s16 = sadd.s32 1, %s12
  $region7: #{psp5_forward.1} parent=0 // loop_footer_branch
    %11 = sbr.rel target = $region3
  $region8: #{psp5_forward.1} parent=0 // loop_exit
    _

</llo_original>
